<compile_context>
chip_gen: v5e
topology: v5e:2x2
jax: 0.10.0
libtpu: 0.0.40
codegen_flags: <defaults>
</compile_context>

<pallas_src>
import functools

import jax
import jax.numpy as jnp
from jax.experimental import pallas as pl
from jax.experimental.pallas import tpu as pltpu


# ----------------------------------------------------------------------------
# Fused kernel: one (nb, C, H*W) batch-block per grid step.
# ----------------------------------------------------------------------------
def _cif_kernel(l_ref, h_ref, wl_ref, wh_ref, b_ref, wspa_ref,
                fc1t_ref, fc2t_ref, o_ref, *, H, W, nb):
    # l_ref / h_ref / o_ref : (nb, C, HW)   lane axis = HW (dense)
    # wl / wh               : (C, C)        1x1-conv halves, (out, in)
    # b_ref                 : (C, 1)
    # wspa_ref (SMEM)       : (9, 2)        3x3 taps (dy,dx row-major) x (mean,max)
    # fc1t / fc2t           : (Cr, C) / (C, Cr)  channel-attention MLP (transposed)
    HW = H * W

    # ---- grid-step invariants (hoisted out of the per-image loop) ----------
    wl = wl_ref[...]
    wh = wh_ref[...]
    b = b_ref[...]
    fc1t = fc1t_ref[...]
    fc2t = fc2t_ref[...]
    wspa = [(wspa_ref[k, 0], wspa_ref[k, 1]) for k in range(9)]   # SMEM scalars

    # Edge-validity masks for SAME zero-padding, built in-kernel from iota
    # (no HBM mask input, no padded scratch).  Column index via exact float
    # floor-division (avoids vector integer div/mod).
    pos = jax.lax.broadcasted_iota(jnp.int32, (1, HW), 1)
    posf = pos.astype(jnp.float32)
    colf = posf - jnp.floor(posf / float(W)) * float(W)
    m_l = jnp.where(colf > 0.5, 1.0, 0.0)               # col > 0
    m_r = jnp.where(colf < float(W) - 1.5, 1.0, 0.0)    # col < W-1
    m_t = jnp.where(pos >= W, 1.0, 0.0)                 # row > 0
    m_b = jnp.where(pos < HW - W, 1.0, 0.0)             # row < H-1

    masks = {}
    for dy in (-1, 0, 1):
        for dx in (-1, 0, 1):
            if dy == 0 and dx == 0:
                continue
            m = None
            if dx == -1:
                m = m_l
            elif dx == 1:
                m = m_r
            if dy == -1:
                m = m_t if m is None else m * m_t
            elif dy == 1:
                m = m_b if m is None else m * m_b
            masks[(dy, dx)] = m

    def per_image(n):
        l = l_ref[n]                                     # (C, HW) lane-dense
        h = h_ref[n]                                     # (C, HW)

        # --- Conv1x1(concat(l, h)): concat fused as two accumulated GEMMs.
        cat = jnp.dot(wl, l, preferred_element_type=jnp.float32)
        cat = cat + jnp.dot(wh, h, preferred_element_type=jnp.float32)
        cat = cat + b                                    # (C, HW)

        # --- SpatialAttention: sigmoid(Conv3x3([mean_c, max_c], pad=1)).
        stat = jnp.concatenate(
            [jnp.mean(cat, axis=0, keepdims=True),
             jnp.max(cat, axis=0, keepdims=True)], axis=0)         # (2, HW)
        conv = wspa[4][0] * stat[0:1, :] + wspa[4][1] * stat[1:2, :]
        k = 0
        for dy in (-1, 0, 1):
            for dx in (-1, 0, 1):
                if dy == 0 and dx == 0:
                    k += 1
                    continue
                # tap[p] = stat[p + dy*W + dx]   (jnp.roll semantics)
                shift = (-(dy * W + dx)) % HW
                tap = pltpu.roll(stat, shift, axis=1)              # XLU rotate
                term = wspa[k][0] * tap[0:1, :] + wspa[k][1] * tap[1:2, :]
                conv = conv + term * masks[(dy, dx)]
                k += 1
        spa = jax.nn.sigmoid(conv)                       # (1, HW)

        lp = l * spa                                     # l * spatial attention

        # --- ChannelAttention(lp): global avg/max pool + shared MLP; the two
        # MLP passes are fused by stacking the pooled vectors along lanes.
        pooled = jnp.concatenate(
            [jnp.mean(lp, axis=1, keepdims=True),
             jnp.max(lp, axis=1, keepdims=True)], axis=1)          # (C, 2)
        hid = jnp.maximum(
            jnp.dot(fc1t, pooled, preferred_element_type=jnp.float32), 0.0)
        att = jnp.dot(fc2t, hid, preferred_element_type=jnp.float32)  # (C, 2)
        cha = jax.nn.sigmoid(att[:, 0:1] + att[:, 1:2])            # (C, 1)

        # --- out = l' + h * cha   (dense, lane-major (C, HW) store)
        o_ref[n] = (lp + h * cha).astype(o_ref.dtype)

    if nb == 1:
        per_image(0)
    else:
        @pl.loop(0, nb)
        def _(n):
            per_image(n)


# ----------------------------------------------------------------------------
# Wrapper: block chooser, BlockSpecs, grid.
# ----------------------------------------------------------------------------
def _images_per_step(n, bytes_per_image):
    """Images per grid step: grow the per-step DMA block (per-step overhead is
    ~0.35us and tiny DMAs run far below the HBM roofline), but keep >= 2 grid
    steps when N >= 2 so the 'parallel' batch axis can feed both v7x TCs."""
    target_bytes = 2 * 1024 * 1024
    nb = max(1, min(n, target_bytes // max(bytes_per_image, 1)))
    if n >= 2:
        nb = min(nb, max(1, n // 2))
    while n % nb:
        nb -= 1
    return nb


def cif_block_apply(params, l, h):
    """CIF_block forward.  l, h: (N, C, H, W) float32, native NCHW layout."""
    N, C, H, W = l.shape
    assert h.shape == l.shape
    HW = H * W
    cr = params["w_fc1"].shape[1]

    l3 = l.reshape(N, C, HW)                 # free reshape (contiguous)
    h3 = h.reshape(N, C, HW)
    # Weights re-oriented for the (C, HW) layout (y = W @ x); tiny one-time ops.
    wl = params["w_cat"][:C, :].T            # (C_out, C_in) half applied to l
    wh = params["w_cat"][C:, :].T            # (C_out, C_in) half applied to h
    b = params["b_cat"].reshape(C, 1)
    fc1t = params["w_fc1"].T                 # (Cr, C)
    fc2t = params["w_fc2"].T                 # (C, Cr)

    nb = _images_per_step(N, 3 * C * HW * 4)             # l + h + out bytes
    block_bytes = nb * C * HW * 4
    # ~3 double-buffered (nb, C, HW) slabs + resident weights + headroom,
    # capped at 48 MiB for v7x's 64 MiB/TC VMEM (v5e/v6e could go higher).
    vmem_bytes = int(min(48 * 1024 * 1024,
                         max(16 * 1024 * 1024, 8 * block_bytes + (2 << 20))))

    kernel = functools.partial(_cif_kernel, H=H, W=W, nb=nb)
    const = lambda n: (0, 0)                 # weights stay resident
    out = pl.pallas_call(
        kernel,
        out_shape=jax.ShapeDtypeStruct((N, C, HW), jnp.float32),
        grid=(N // nb,),
        in_specs=[
            pl.BlockSpec((nb, C, HW), lambda n: (n, 0, 0)),        # l
            pl.BlockSpec((nb, C, HW), lambda n: (n, 0, 0)),        # h
            pl.BlockSpec((C, C), const),                           # wl
            pl.BlockSpec((C, C), const),                           # wh
            pl.BlockSpec((C, 1), const),                           # bias
            pl.BlockSpec(memory_space=pltpu.MemorySpace.SMEM),     # w_spa (9,2)
            pl.BlockSpec((cr, C), const),                          # fc1^T
            pl.BlockSpec((C, cr), const),                          # fc2^T
        ],
        out_specs=pl.BlockSpec((nb, C, HW), lambda n: (n, 0, 0)),
        compiler_params=pltpu.CompilerParams(
            dimension_semantics=("parallel",),       # batch across TensorCores
            vmem_limit_bytes=vmem_bytes),
    )(l3, h3, wl, wh, b, params["w_spa"], fc1t, fc2t)
    return out.reshape(N, C, H, W)


# ----------------------------------------------------------------------------
# Parameters (deterministic, PyTorch-default-style uniform init).
# ----------------------------------------------------------------------------
def init_params(key, c, ratio=16):
    k1, k2, k3, k4, k5 = jax.random.split(key, 5)
    cr = max(1, c // ratio)

    def u(k, shape, fan_in):
        bound = 1.0 / float(fan_in) ** 0.5
        return jax.random.uniform(k, shape, jnp.float32, -bound, bound)

    return {
        # nn.Conv2d(2C, C, 1) with bias, stored as (2C, C) for x @ W
        "w_cat": u(k1, (2 * c, c), 2 * c),
        "b_cat": u(k2, (c,), 2 * c),
        # SpatialAttention conv: nn.Conv2d(2, 1, 3, padding=1, bias=False)
        # taps ordered (dy, dx) row-major; channels = (mean, max)
        "w_spa": u(k3, (9, 2), 2 * 9),
        # ChannelAttention shared MLP (bias-free 1x1 convs)
        "w_fc1": u(k4, (c, cr), c),
        "w_fc2": u(k5, (cr, c), cr),
    }


# ----------------------------------------------------------------------------
# Pure-JAX reference (mirrors the PyTorch forward, NCHW) for validation.
# ----------------------------------------------------------------------------
def cif_block_reference(params, l, h):
    hi = jax.lax.Precision.HIGHEST
    cat = jnp.concatenate([l, h], axis=1)                          # (N,2C,H,W)
    y = jnp.einsum("nchw,cd->ndhw", cat, params["w_cat"], precision=hi)
    y = y + params["b_cat"][None, :, None, None]
    stat = jnp.concatenate([jnp.mean(y, axis=1, keepdims=True),
                            jnp.max(y, axis=1, keepdims=True)], axis=1)
    w = params["w_spa"].reshape(3, 3, 2, 1)                        # HWIO
    conv = jax.lax.conv_general_dilated(
        stat, w, window_strides=(1, 1), padding="SAME",
        dimension_numbers=("NCHW", "HWIO", "NCHW"), precision=hi)
    lp = l * jax.nn.sigmoid(conv)

    def mlp(v):
        hdn = jnp.maximum(jnp.dot(v, params["w_fc1"], precision=hi), 0.0)
        return jnp.dot(hdn, params["w_fc2"], precision=hi)

    cha = jax.nn.sigmoid(mlp(jnp.mean(lp, axis=(2, 3)))
                         + mlp(jnp.max(lp, axis=(2, 3))))
    return lp + h * cha[:, :, None, None]


# ----------------------------------------------------------------------------
if __name__ == "__main__":
    key = jax.random.PRNGKey(0)
    pkey, lkey, hkey = jax.random.split(key, 3)

    N, C, H, W = 2, 32, 16, 16                 # NCHW, as in the PyTorch spec
    l = jax.random.normal(lkey, (N, C, H, W), jnp.float32)
    h = jax.random.normal(hkey, (N, C, H, W), jnp.float32)
    params = init_params(pkey, C)

    fwd = jax.jit(functools.partial(cif_block_apply, params))
    out = jax.block_until_ready(fwd(l, h))

    ref = cif_block_reference(params, l, h)
    assert out.shape == (N, C, H, W), out.shape
    assert bool(jnp.all(jnp.isfinite(out)))
    max_err = float(jnp.max(jnp.abs(out - ref)))
    assert max_err < 5e-3, f"mismatch vs pure-JAX reference: {max_err}"
    print("KERNEL_OK")
</pallas_src>

<mosaic_0001>
module attributes {stable_mosaic.version = 11 : i64} {
  func.func @_cif_kernel(%arg0: i32, %arg1: memref<1x32x256xf32, #tpu.memory_space<vmem>>, %arg2: memref<1x32x256xf32, #tpu.memory_space<vmem>>, %arg3: memref<32x32xf32, #tpu.memory_space<vmem>>, %arg4: memref<32x32xf32, #tpu.memory_space<vmem>>, %arg5: memref<32x1xf32, #tpu.memory_space<vmem>>, %arg6: memref<9x2xf32, #tpu.memory_space<smem>>, %arg7: memref<2x32xf32, #tpu.memory_space<vmem>>, %arg8: memref<32x2xf32, #tpu.memory_space<vmem>>, %arg9: memref<1x32x256xf32, #tpu.memory_space<vmem>>) attributes {dimension_semantics = [#tpu.dimension_semantics<parallel>], iteration_bounds = array<i64: 2>, scalar_prefetch = 0 : i64, scratch_operands = 0 : i64, tpu.core_type = #tpu.core_type<tc>, window_params = [{transform_indices = @transform_0, window_bounds = array<i64: 1, 32, 256>}, {transform_indices = @transform_1, window_bounds = array<i64: 1, 32, 256>}, {pipeline_mode = #tpu.pipeline_mode<synchronous>, transform_indices = @transform_2, window_bounds = array<i64: 32, 32>}, {pipeline_mode = #tpu.pipeline_mode<synchronous>, transform_indices = @transform_3, window_bounds = array<i64: 32, 32>}, {pipeline_mode = #tpu.pipeline_mode<synchronous>, transform_indices = @transform_4, window_bounds = array<i64: 32, 1>}, {transform_indices = @transform_5, window_bounds = array<i64: 9, 2>}, {pipeline_mode = #tpu.pipeline_mode<synchronous>, transform_indices = @transform_6, window_bounds = array<i64: 2, 32>}, {pipeline_mode = #tpu.pipeline_mode<synchronous>, transform_indices = @transform_7, window_bounds = array<i64: 32, 2>}, {transform_indices = @transform_8, window_bounds = array<i64: 1, 32, 256>}]} {
    %c0 = arith.constant 0 : index
    %c0_0 = arith.constant 0 : index
    %0 = vector.load %arg3[%c0, %c0_0] : memref<32x32xf32, #tpu.memory_space<vmem>>, vector<32x32xf32>
    %c0_1 = arith.constant 0 : index
    %c0_2 = arith.constant 0 : index
    %1 = vector.load %arg4[%c0_1, %c0_2] : memref<32x32xf32, #tpu.memory_space<vmem>>, vector<32x32xf32>
    %c0_3 = arith.constant 0 : index
    %c0_4 = arith.constant 0 : index
    %2 = vector.load %arg5[%c0_3, %c0_4] : memref<32x1xf32, #tpu.memory_space<vmem>>, vector<32x1xf32>
    %c0_5 = arith.constant 0 : index
    %c0_6 = arith.constant 0 : index
    %3 = vector.load %arg7[%c0_5, %c0_6] : memref<2x32xf32, #tpu.memory_space<vmem>>, vector<2x32xf32>
    %c0_7 = arith.constant 0 : index
    %c0_8 = arith.constant 0 : index
    %4 = vector.load %arg8[%c0_7, %c0_8] : memref<32x2xf32, #tpu.memory_space<vmem>>, vector<32x2xf32>
    %c0_9 = arith.constant 0 : index
    %c0_10 = arith.constant 0 : index
    %5 = memref.load %arg6[%c0_9, %c0_10] : memref<9x2xf32, #tpu.memory_space<smem>>
    %c0_11 = arith.constant 0 : index
    %c1 = arith.constant 1 : index
    %6 = memref.load %arg6[%c0_11, %c1] : memref<9x2xf32, #tpu.memory_space<smem>>
    %c1_12 = arith.constant 1 : index
    %c0_13 = arith.constant 0 : index
    %7 = memref.load %arg6[%c1_12, %c0_13] : memref<9x2xf32, #tpu.memory_space<smem>>
    %c1_14 = arith.constant 1 : index
    %c1_15 = arith.constant 1 : index
    %8 = memref.load %arg6[%c1_14, %c1_15] : memref<9x2xf32, #tpu.memory_space<smem>>
    %c2 = arith.constant 2 : index
    %c0_16 = arith.constant 0 : index
    %9 = memref.load %arg6[%c2, %c0_16] : memref<9x2xf32, #tpu.memory_space<smem>>
    %c2_17 = arith.constant 2 : index
    %c1_18 = arith.constant 1 : index
    %10 = memref.load %arg6[%c2_17, %c1_18] : memref<9x2xf32, #tpu.memory_space<smem>>
    %c3 = arith.constant 3 : index
    %c0_19 = arith.constant 0 : index
    %11 = memref.load %arg6[%c3, %c0_19] : memref<9x2xf32, #tpu.memory_space<smem>>
    %c3_20 = arith.constant 3 : index
    %c1_21 = arith.constant 1 : index
    %12 = memref.load %arg6[%c3_20, %c1_21] : memref<9x2xf32, #tpu.memory_space<smem>>
    %c4 = arith.constant 4 : index
    %c0_22 = arith.constant 0 : index
    %13 = memref.load %arg6[%c4, %c0_22] : memref<9x2xf32, #tpu.memory_space<smem>>
    %c4_23 = arith.constant 4 : index
    %c1_24 = arith.constant 1 : index
    %14 = memref.load %arg6[%c4_23, %c1_24] : memref<9x2xf32, #tpu.memory_space<smem>>
    %c5 = arith.constant 5 : index
    %c0_25 = arith.constant 0 : index
    %15 = memref.load %arg6[%c5, %c0_25] : memref<9x2xf32, #tpu.memory_space<smem>>
    %c5_26 = arith.constant 5 : index
    %c1_27 = arith.constant 1 : index
    %16 = memref.load %arg6[%c5_26, %c1_27] : memref<9x2xf32, #tpu.memory_space<smem>>
    %c6 = arith.constant 6 : index
    %c0_28 = arith.constant 0 : index
    %17 = memref.load %arg6[%c6, %c0_28] : memref<9x2xf32, #tpu.memory_space<smem>>
    %c6_29 = arith.constant 6 : index
    %c1_30 = arith.constant 1 : index
    %18 = memref.load %arg6[%c6_29, %c1_30] : memref<9x2xf32, #tpu.memory_space<smem>>
    %c7 = arith.constant 7 : index
    %c0_31 = arith.constant 0 : index
    %19 = memref.load %arg6[%c7, %c0_31] : memref<9x2xf32, #tpu.memory_space<smem>>
    %c7_32 = arith.constant 7 : index
    %c1_33 = arith.constant 1 : index
    %20 = memref.load %arg6[%c7_32, %c1_33] : memref<9x2xf32, #tpu.memory_space<smem>>
    %c8 = arith.constant 8 : index
    %c0_34 = arith.constant 0 : index
    %21 = memref.load %arg6[%c8, %c0_34] : memref<9x2xf32, #tpu.memory_space<smem>>
    %c8_35 = arith.constant 8 : index
    %c1_36 = arith.constant 1 : index
    %22 = memref.load %arg6[%c8_35, %c1_36] : memref<9x2xf32, #tpu.memory_space<smem>>
    %23 = tpu.iota {dimensions = array<i32: 1>} : vector<1x256xi32>
    %24 = arith.sitofp %23 : vector<1x256xi32> to vector<1x256xf32>
    %cst = arith.constant 1.600000e+01 : f32
    %25 = vector.broadcast %cst : f32 to vector<1x256xf32>
    %26 = arith.divf %24, %25 : vector<1x256xf32>
    %27 = math.floor %26 : vector<1x256xf32>
    %cst_37 = arith.constant 1.600000e+01 : f32
    %28 = vector.broadcast %cst_37 : f32 to vector<1x256xf32>
    %29 = arith.mulf %27, %28 : vector<1x256xf32>
    %30 = arith.subf %24, %29 : vector<1x256xf32>
    %cst_38 = arith.constant 5.000000e-01 : f32
    %31 = vector.broadcast %cst_38 : f32 to vector<1x256xf32>
    %32 = arith.cmpf ogt, %30, %31 : vector<1x256xf32>
    %cst_39 = arith.constant 1.000000e+00 : f32
    %cst_40 = arith.constant 0.000000e+00 : f32
    %33 = vector.broadcast %cst_39 : f32 to vector<1x256xf32>
    %34 = vector.broadcast %cst_40 : f32 to vector<1x256xf32>
    %35 = arith.select %32, %33, %34 : vector<1x256xi1>, vector<1x256xf32>
    %cst_41 = arith.constant 1.450000e+01 : f32
    %36 = vector.broadcast %cst_41 : f32 to vector<1x256xf32>
    %37 = arith.cmpf olt, %30, %36 : vector<1x256xf32>
    %cst_42 = arith.constant 1.000000e+00 : f32
    %cst_43 = arith.constant 0.000000e+00 : f32
    %38 = vector.broadcast %cst_42 : f32 to vector<1x256xf32>
    %39 = vector.broadcast %cst_43 : f32 to vector<1x256xf32>
    %40 = arith.select %37, %38, %39 : vector<1x256xi1>, vector<1x256xf32>
    %c16_i32 = arith.constant 16 : i32
    %41 = vector.broadcast %c16_i32 : i32 to vector<1x256xi32>
    %42 = arith.cmpi sge, %23, %41 : vector<1x256xi32>
    %cst_44 = arith.constant 1.000000e+00 : f32
    %cst_45 = arith.constant 0.000000e+00 : f32
    %43 = vector.broadcast %cst_44 : f32 to vector<1x256xf32>
    %44 = vector.broadcast %cst_45 : f32 to vector<1x256xf32>
    %45 = arith.select %42, %43, %44 : vector<1x256xi1>, vector<1x256xf32>
    %c240_i32 = arith.constant 240 : i32
    %46 = vector.broadcast %c240_i32 : i32 to vector<1x256xi32>
    %47 = arith.cmpi slt, %23, %46 : vector<1x256xi32>
    %cst_46 = arith.constant 1.000000e+00 : f32
    %cst_47 = arith.constant 0.000000e+00 : f32
    %48 = vector.broadcast %cst_46 : f32 to vector<1x256xf32>
    %49 = vector.broadcast %cst_47 : f32 to vector<1x256xf32>
    %50 = arith.select %47, %48, %49 : vector<1x256xi1>, vector<1x256xf32>
    %51 = arith.mulf %35, %45 : vector<1x256xf32>
    %52 = arith.mulf %40, %45 : vector<1x256xf32>
    %53 = arith.mulf %35, %50 : vector<1x256xf32>
    %54 = arith.mulf %40, %50 : vector<1x256xf32>
    %c0_48 = arith.constant 0 : index
    %c0_49 = arith.constant 0 : index
    %c0_50 = arith.constant 0 : index
    %55 = vector.load %arg1[%c0_48, %c0_49, %c0_50] : memref<1x32x256xf32, #tpu.memory_space<vmem>>, vector<1x32x256xf32>
    %56 = vector.shape_cast %55 : vector<1x32x256xf32> to vector<32x256xf32>
    %c0_51 = arith.constant 0 : index
    %c0_52 = arith.constant 0 : index
    %c0_53 = arith.constant 0 : index
    %57 = vector.load %arg2[%c0_51, %c0_52, %c0_53] : memref<1x32x256xf32, #tpu.memory_space<vmem>>, vector<1x32x256xf32>
    %58 = vector.shape_cast %57 : vector<1x32x256xf32> to vector<32x256xf32>
    %cst_54 = arith.constant dense<0.000000e+00> : vector<32x256xf32>
    %59 = tpu.matmul %0, %56, %cst_54 {dimension_numbers = #tpu.dot_dimension_numbers<[1], [0], [0], [1], [0, 0, 1, 1], [], []>} : vector<32x32xf32>, vector<32x256xf32>, vector<32x256xf32> -> vector<32x256xf32>
    %cst_55 = arith.constant dense<0.000000e+00> : vector<32x256xf32>
    %60 = tpu.matmul %1, %58, %cst_55 {dimension_numbers = #tpu.dot_dimension_numbers<[1], [0], [0], [1], [0, 0, 1, 1], [], []>} : vector<32x32xf32>, vector<32x256xf32>, vector<32x256xf32> -> vector<32x256xf32>
    %61 = arith.addf %59, %60 : vector<32x256xf32>
    %62 = vector.broadcast %2 : vector<32x1xf32> to vector<32x256xf32>
    %63 = arith.addf %61, %62 : vector<32x256xf32>
    %cst_56 = arith.constant dense<0.000000e+00> : vector<256xf32>
    %64 = vector.multi_reduction <add>, %63, %cst_56 [0] : vector<32x256xf32> to vector<256xf32>
    %65 = vector.shape_cast %64 : vector<256xf32> to vector<1x256xf32>
    %cst_57 = arith.constant 3.200000e+01 : f32
    %66 = vector.broadcast %cst_57 : f32 to vector<1x256xf32>
    %67 = arith.divf %65, %66 : vector<1x256xf32>
    %cst_58 = arith.constant dense<0xFF800000> : vector<256xf32>
    %68 = vector.multi_reduction <maximumf>, %63, %cst_58 [0] : vector<32x256xf32> to vector<256xf32>
    %69 = vector.shape_cast %68 : vector<256xf32> to vector<1x256xf32>
    %70 = tpu.concatenate %67, %69 in 0 : vector<1x256xf32>, vector<1x256xf32> -> vector<2x256xf32>
    %71 = vector.extract_strided_slice %70 {offsets = [0, 0], sizes = [1, 256], strides = [1, 1]} : vector<2x256xf32> to vector<1x256xf32>
    %72 = vector.broadcast %13 : f32 to vector<1x256xf32>
    %73 = arith.mulf %72, %71 : vector<1x256xf32>
    %74 = vector.extract_strided_slice %70 {offsets = [1, 0], sizes = [1, 256], strides = [1, 1]} : vector<2x256xf32> to vector<1x256xf32>
    %75 = vector.broadcast %14 : f32 to vector<1x256xf32>
    %76 = arith.mulf %75, %74 : vector<1x256xf32>
    %77 = arith.addf %73, %76 : vector<1x256xf32>
    %c17_i32 = arith.constant 17 : i32
    %78 = tpu.dynamic_rotate %70 by %c17_i32 dim 1 : vector<2x256xf32>, i32 -> vector<2x256xf32>
    %79 = vector.extract_strided_slice %78 {offsets = [0, 0], sizes = [1, 256], strides = [1, 1]} : vector<2x256xf32> to vector<1x256xf32>
    %80 = vector.broadcast %5 : f32 to vector<1x256xf32>
    %81 = arith.mulf %80, %79 : vector<1x256xf32>
    %82 = vector.extract_strided_slice %78 {offsets = [1, 0], sizes = [1, 256], strides = [1, 1]} : vector<2x256xf32> to vector<1x256xf32>
    %83 = vector.broadcast %6 : f32 to vector<1x256xf32>
    %84 = arith.mulf %83, %82 : vector<1x256xf32>
    %85 = arith.addf %81, %84 : vector<1x256xf32>
    %86 = arith.mulf %85, %51 : vector<1x256xf32>
    %87 = arith.addf %77, %86 : vector<1x256xf32>
    %c16_i32_59 = arith.constant 16 : i32
    %88 = tpu.dynamic_rotate %70 by %c16_i32_59 dim 1 : vector<2x256xf32>, i32 -> vector<2x256xf32>
    %89 = vector.extract_strided_slice %88 {offsets = [0, 0], sizes = [1, 256], strides = [1, 1]} : vector<2x256xf32> to vector<1x256xf32>
    %90 = vector.broadcast %7 : f32 to vector<1x256xf32>
    %91 = arith.mulf %90, %89 : vector<1x256xf32>
    %92 = vector.extract_strided_slice %88 {offsets = [1, 0], sizes = [1, 256], strides = [1, 1]} : vector<2x256xf32> to vector<1x256xf32>
    %93 = vector.broadcast %8 : f32 to vector<1x256xf32>
    %94 = arith.mulf %93, %92 : vector<1x256xf32>
    %95 = arith.addf %91, %94 : vector<1x256xf32>
    %96 = arith.mulf %95, %45 : vector<1x256xf32>
    %97 = arith.addf %87, %96 : vector<1x256xf32>
    %c15_i32 = arith.constant 15 : i32
    %98 = tpu.dynamic_rotate %70 by %c15_i32 dim 1 : vector<2x256xf32>, i32 -> vector<2x256xf32>
    %99 = vector.extract_strided_slice %98 {offsets = [0, 0], sizes = [1, 256], strides = [1, 1]} : vector<2x256xf32> to vector<1x256xf32>
    %100 = vector.broadcast %9 : f32 to vector<1x256xf32>
    %101 = arith.mulf %100, %99 : vector<1x256xf32>
    %102 = vector.extract_strided_slice %98 {offsets = [1, 0], sizes = [1, 256], strides = [1, 1]} : vector<2x256xf32> to vector<1x256xf32>
    %103 = vector.broadcast %10 : f32 to vector<1x256xf32>
    %104 = arith.mulf %103, %102 : vector<1x256xf32>
    %105 = arith.addf %101, %104 : vector<1x256xf32>
    %106 = arith.mulf %105, %52 : vector<1x256xf32>
    %107 = arith.addf %97, %106 : vector<1x256xf32>
    %c1_i32 = arith.constant 1 : i32
    %108 = tpu.dynamic_rotate %70 by %c1_i32 dim 1 : vector<2x256xf32>, i32 -> vector<2x256xf32>
    %109 = vector.extract_strided_slice %108 {offsets = [0, 0], sizes = [1, 256], strides = [1, 1]} : vector<2x256xf32> to vector<1x256xf32>
    %110 = vector.broadcast %11 : f32 to vector<1x256xf32>
    %111 = arith.mulf %110, %109 : vector<1x256xf32>
    %112 = vector.extract_strided_slice %108 {offsets = [1, 0], sizes = [1, 256], strides = [1, 1]} : vector<2x256xf32> to vector<1x256xf32>
    %113 = vector.broadcast %12 : f32 to vector<1x256xf32>
    %114 = arith.mulf %113, %112 : vector<1x256xf32>
    %115 = arith.addf %111, %114 : vector<1x256xf32>
    %116 = arith.mulf %115, %35 : vector<1x256xf32>
    %117 = arith.addf %107, %116 : vector<1x256xf32>
    %c255_i32 = arith.constant 255 : i32
    %118 = tpu.dynamic_rotate %70 by %c255_i32 dim 1 : vector<2x256xf32>, i32 -> vector<2x256xf32>
    %119 = vector.extract_strided_slice %118 {offsets = [0, 0], sizes = [1, 256], strides = [1, 1]} : vector<2x256xf32> to vector<1x256xf32>
    %120 = vector.broadcast %15 : f32 to vector<1x256xf32>
    %121 = arith.mulf %120, %119 : vector<1x256xf32>
    %122 = vector.extract_strided_slice %118 {offsets = [1, 0], sizes = [1, 256], strides = [1, 1]} : vector<2x256xf32> to vector<1x256xf32>
    %123 = vector.broadcast %16 : f32 to vector<1x256xf32>
    %124 = arith.mulf %123, %122 : vector<1x256xf32>
    %125 = arith.addf %121, %124 : vector<1x256xf32>
    %126 = arith.mulf %125, %40 : vector<1x256xf32>
    %127 = arith.addf %117, %126 : vector<1x256xf32>
    %c241_i32 = arith.constant 241 : i32
    %128 = tpu.dynamic_rotate %70 by %c241_i32 dim 1 : vector<2x256xf32>, i32 -> vector<2x256xf32>
    %129 = vector.extract_strided_slice %128 {offsets = [0, 0], sizes = [1, 256], strides = [1, 1]} : vector<2x256xf32> to vector<1x256xf32>
    %130 = vector.broadcast %17 : f32 to vector<1x256xf32>
    %131 = arith.mulf %130, %129 : vector<1x256xf32>
    %132 = vector.extract_strided_slice %128 {offsets = [1, 0], sizes = [1, 256], strides = [1, 1]} : vector<2x256xf32> to vector<1x256xf32>
    %133 = vector.broadcast %18 : f32 to vector<1x256xf32>
    %134 = arith.mulf %133, %132 : vector<1x256xf32>
    %135 = arith.addf %131, %134 : vector<1x256xf32>
    %136 = arith.mulf %135, %53 : vector<1x256xf32>
    %137 = arith.addf %127, %136 : vector<1x256xf32>
    %c240_i32_60 = arith.constant 240 : i32
    %138 = tpu.dynamic_rotate %70 by %c240_i32_60 dim 1 : vector<2x256xf32>, i32 -> vector<2x256xf32>
    %139 = vector.extract_strided_slice %138 {offsets = [0, 0], sizes = [1, 256], strides = [1, 1]} : vector<2x256xf32> to vector<1x256xf32>
    %140 = vector.broadcast %19 : f32 to vector<1x256xf32>
    %141 = arith.mulf %140, %139 : vector<1x256xf32>
    %142 = vector.extract_strided_slice %138 {offsets = [1, 0], sizes = [1, 256], strides = [1, 1]} : vector<2x256xf32> to vector<1x256xf32>
    %143 = vector.broadcast %20 : f32 to vector<1x256xf32>
    %144 = arith.mulf %143, %142 : vector<1x256xf32>
    %145 = arith.addf %141, %144 : vector<1x256xf32>
    %146 = arith.mulf %145, %50 : vector<1x256xf32>
    %147 = arith.addf %137, %146 : vector<1x256xf32>
    %c239_i32 = arith.constant 239 : i32
    %148 = tpu.dynamic_rotate %70 by %c239_i32 dim 1 : vector<2x256xf32>, i32 -> vector<2x256xf32>
    %149 = vector.extract_strided_slice %148 {offsets = [0, 0], sizes = [1, 256], strides = [1, 1]} : vector<2x256xf32> to vector<1x256xf32>
    %150 = vector.broadcast %21 : f32 to vector<1x256xf32>
    %151 = arith.mulf %150, %149 : vector<1x256xf32>
    %152 = vector.extract_strided_slice %148 {offsets = [1, 0], sizes = [1, 256], strides = [1, 1]} : vector<2x256xf32> to vector<1x256xf32>
    %153 = vector.broadcast %22 : f32 to vector<1x256xf32>
    %154 = arith.mulf %153, %152 : vector<1x256xf32>
    %155 = arith.addf %151, %154 : vector<1x256xf32>
    %156 = arith.mulf %155, %54 : vector<1x256xf32>
    %157 = arith.addf %147, %156 : vector<1x256xf32>
    %158 = arith.negf %157 : vector<1x256xf32>
    %159 = math.exp %158 : vector<1x256xf32>
    %cst_61 = arith.constant 1.000000e+00 : f32
    %160 = vector.broadcast %cst_61 : f32 to vector<1x256xf32>
    %161 = arith.addf %160, %159 : vector<1x256xf32>
    %162 = arith.divf %160, %161 : vector<1x256xf32>
    %163 = vector.broadcast %162 : vector<1x256xf32> to vector<32x256xf32>
    %164 = arith.mulf %56, %163 : vector<32x256xf32>
    %cst_62 = arith.constant dense<0.000000e+00> : vector<32xf32>
    %165 = vector.multi_reduction <add>, %164, %cst_62 [1] : vector<32x256xf32> to vector<32xf32>
    %166 = vector.shape_cast %165 : vector<32xf32> to vector<32x1xf32>
    %cst_63 = arith.constant 2.560000e+02 : f32
    %167 = vector.broadcast %cst_63 : f32 to vector<32x1xf32>
    %168 = arith.divf %166, %167 : vector<32x1xf32>
    %cst_64 = arith.constant dense<0xFF800000> : vector<32xf32>
    %169 = vector.multi_reduction <maximumf>, %164, %cst_64 [1] : vector<32x256xf32> to vector<32xf32>
    %170 = vector.shape_cast %169 : vector<32xf32> to vector<32x1xf32>
    %171 = tpu.concatenate %168, %170 in 1 : vector<32x1xf32>, vector<32x1xf32> -> vector<32x2xf32>
    %cst_65 = arith.constant dense<0.000000e+00> : vector<2x2xf32>
    %172 = tpu.matmul %3, %171, %cst_65 {dimension_numbers = #tpu.dot_dimension_numbers<[1], [0], [0], [1], [0, 0, 1, 1], [], []>} : vector<2x32xf32>, vector<32x2xf32>, vector<2x2xf32> -> vector<2x2xf32>
    %cst_66 = arith.constant 0.000000e+00 : f32
    %173 = vector.broadcast %cst_66 : f32 to vector<2x2xf32>
    %174 = arith.maximumf %172, %173 : vector<2x2xf32>
    %cst_67 = arith.constant dense<0.000000e+00> : vector<32x2xf32>
    %175 = tpu.matmul %4, %174, %cst_67 {dimension_numbers = #tpu.dot_dimension_numbers<[1], [0], [0], [1], [0, 0, 1, 1], [], []>} : vector<32x2xf32>, vector<2x2xf32>, vector<32x2xf32> -> vector<32x2xf32>
    %176 = vector.extract_strided_slice %175 {offsets = [0, 0], sizes = [32, 1], strides = [1, 1]} : vector<32x2xf32> to vector<32x1xf32>
    %177 = vector.extract_strided_slice %175 {offsets = [0, 1], sizes = [32, 1], strides = [1, 1]} : vector<32x2xf32> to vector<32x1xf32>
    %178 = arith.addf %176, %177 : vector<32x1xf32>
    %179 = arith.negf %178 : vector<32x1xf32>
    %180 = math.exp %179 : vector<32x1xf32>
    %cst_68 = arith.constant 1.000000e+00 : f32
    %181 = vector.broadcast %cst_68 : f32 to vector<32x1xf32>
    %182 = arith.addf %181, %180 : vector<32x1xf32>
    %183 = arith.divf %181, %182 : vector<32x1xf32>
    %184 = vector.broadcast %183 : vector<32x1xf32> to vector<32x256xf32>
    %185 = arith.mulf %58, %184 : vector<32x256xf32>
    %186 = arith.addf %164, %185 : vector<32x256xf32>
    %c0_69 = arith.constant 0 : index
    %c0_70 = arith.constant 0 : index
    %c0_71 = arith.constant 0 : index
    %187 = vector.load %arg9[%c0_69, %c0_70, %c0_71] : memref<1x32x256xf32, #tpu.memory_space<vmem>>, vector<1x32x256xf32>
    %188 = vector.shape_cast %187 : vector<1x32x256xf32> to vector<32x256xf32>
    %189 = vector.shape_cast %186 : vector<32x256xf32> to vector<1x32x256xf32>
    tpu.vector_store %arg9[%c0_69, %c0_70, %c0_71], %189 {strides = array<i32>} : memref<1x32x256xf32, #tpu.memory_space<vmem>>, vector<1x32x256xf32>,
    return
  }
  func.func @transform_0(%arg0: i32) -> (i32, i32, i32) {
    %c0_i32 = arith.constant 0 : i32
    %c0_i32_0 = arith.constant 0 : i32
    %c0_i32_1 = arith.constant 0 : i32
    return %arg0, %c0_i32, %c0_i32_0 : i32, i32, i32
  }
  func.func @transform_1(%arg0: i32) -> (i32, i32, i32) {
    %c0_i32 = arith.constant 0 : i32
    %c0_i32_0 = arith.constant 0 : i32
    %c0_i32_1 = arith.constant 0 : i32
    return %arg0, %c0_i32, %c0_i32_0 : i32, i32, i32
  }
  func.func @transform_2(%arg0: i32) -> (i32, i32) {
    %c0_i32 = arith.constant 0 : i32
    %c0_i32_0 = arith.constant 0 : i32
    %c0_i32_1 = arith.constant 0 : i32
    return %c0_i32, %c0_i32_0 : i32, i32
  }
  func.func @transform_3(%arg0: i32) -> (i32, i32) {
    %c0_i32 = arith.constant 0 : i32
    %c0_i32_0 = arith.constant 0 : i32
    %c0_i32_1 = arith.constant 0 : i32
    return %c0_i32, %c0_i32_0 : i32, i32
  }
  func.func @transform_4(%arg0: i32) -> (i32, i32) {
    %c0_i32 = arith.constant 0 : i32
    %c0_i32_0 = arith.constant 0 : i32
    %c0_i32_1 = arith.constant 0 : i32
    return %c0_i32, %c0_i32_0 : i32, i32
  }
  func.func @transform_5(%arg0: i32) -> (i32, i32) {
    %c0_i32 = arith.constant 0 : i32
    %c0_i32_0 = arith.constant 0 : i32
    %c0_i32_1 = arith.constant 0 : i32
    return %c0_i32, %c0_i32_0 : i32, i32
  }
  func.func @transform_6(%arg0: i32) -> (i32, i32) {
    %c0_i32 = arith.constant 0 : i32
    %c0_i32_0 = arith.constant 0 : i32
    %c0_i32_1 = arith.constant 0 : i32
    return %c0_i32, %c0_i32_0 : i32, i32
  }
  func.func @transform_7(%arg0: i32) -> (i32, i32) {
    %c0_i32 = arith.constant 0 : i32
    %c0_i32_0 = arith.constant 0 : i32
    %c0_i32_1 = arith.constant 0 : i32
    return %c0_i32, %c0_i32_0 : i32, i32
  }
  func.func @transform_8(%arg0: i32) -> (i32, i32, i32) {
    %c0_i32 = arith.constant 0 : i32
    %c0_i32_0 = arith.constant 0 : i32
    %c0_i32_1 = arith.constant 0 : i32
    return %arg0, %c0_i32, %c0_i32_0 : i32, i32, i32
  }
}

</mosaic_0001>

<llo_original>
// kernel: cif_block_apply.1
$region0: #{cif_block_apply.1}
  #allocation0 [shape = 'u32[]', space=smem, size = 0x4, offset = 0x4, fixed_abs, tag = 'smem constant byte address 0x4 - core index']
  #allocation1 [shape = 'u32[72,128]{1,0:T(1,128)}', space=vmem, size = 0x9000, scoped, tag = 'internal scratch']
  %s0 = inlined_call_operand.vmem [shape: f32[2,32,256], index: 0, kind: input, shape index: {}]
  %s1 = inlined_call_operand.vmem [shape: f32[2,32,256], index: 1, kind: input, shape index: {}]
  %s2 = inlined_call_operand.vmem [shape: f32[32,32], index: 2, kind: input, shape index: {}]
  %s3 = inlined_call_operand.vmem [shape: f32[32,32], index: 3, kind: input, shape index: {}]
  %s4 = inlined_call_operand.vmem [shape: f32[32,1], index: 4, kind: input, shape index: {}]
  %s5 = inlined_call_operand.vmem [shape: f32[9,2], index: 5, kind: input, shape index: {}]
  %s6 = inlined_call_operand.vmem [shape: f32[2,32], index: 6, kind: input, shape index: {}]
  %s7 = inlined_call_operand.vmem [shape: f32[32,2], index: 7, kind: input, shape index: {}]
  %s8 = inlined_call_operand.vmem [shape: f32[2,32,256], index: 8, kind: output, shape index: {}]
  %s9 = sld [smem:[#allocation0]]
  $region69: #{cif_block_apply.1} parent=0
    _
  %s11 = ssub.s32 1, %s9
  %s12 = scalar_select 0, %s11, %s9
  $region1: #{cif_block_apply.1} parent=0
    #allocation2 [shape = 'u8[8192]{0}', space=smem, size = 0x2000, scoped, tag = 'input window, operand 5, single buffered']
    #allocation3 [shape = 's32[2]{0}', space=sflag, size = 0x8, scoped, tag = 'scoped memory for cif_block_apply.1']
    %13 = vsyncpa [#allocation3], 0
    loop: start=0, step=1, limit=4
    $region2: #{cif_block_apply.1} parent=1 // loop_pre_header
      _
    $region3: #{cif_block_apply.1} parent=1 // loop_header
      %s15 = sphi 0, %s19
      %p16 = scmp.ge.s32.totalorder %s15, 4
      %s25 = sphi 0, %s27
      %s28 = sphi 0, %s25
      %s29 = sphi 0, %s28
      %s45 = sphi 0, %s29
      %s51 = sphi 0, %s53
      %s54 = sphi 0, %s51
      %s55 = sphi 0, %s54
      %s71 = sphi 0, %s55
      %s75 = sphi 0, %s75
      %s77 = sphi 0, %s75
      %s78 = sphi 0, %s77
      %s92 = sphi 0, %s78
      %s96 = sphi 0, %s96
      %s98 = sphi 0, %s96
      %s99 = sphi 0, %s98
      %s113 = sphi 0, %s99
      %s117 = sphi 0, %s117
      %s119 = sphi 0, %s117
      %s120 = sphi 0, %s119
      %s134 = sphi 0, %s120
      %s138 = sphi 0, %s138
      %s140 = sphi 0, %s138
      %s141 = sphi 0, %s140
      %s155 = sphi 0, %s141
      %s159 = sphi 0, %s159
      %s161 = sphi 0, %s159
      %s162 = sphi 0, %s161
      %s176 = sphi 0, %s162
      %s180 = sphi 0, %s180
      %s182 = sphi 0, %s180
      %s183 = sphi 0, %s182
      %s197 = sphi 0, %s183
      %s203 = sphi 0, %s205
      %s206 = sphi 0, %s203
      %s207 = sphi 0, %s206
      %s223 = sphi 0, %s207
    $region4: #{cif_block_apply.1} parent=1 // loop_header_branch
      %18 = sbr.rel (%p16) target = $region8
    $region5: #{cif_block_apply.1} parent=1 // loop_body
      %s20 = ssub.s32 %s15, 1
      %s21 = ssub.s32 %s15, 2
      %s22 = sadd.s32 %s15, 1
      %s23 = ssub.s32 %s15, %s22
      %p24 = scmp.eq.s32.totalorder %s23, 0
      %s26 = sadd.s32 %s25, 1
      %s27 = scalar_select %p24, %s25, %s26
      %p30 = pneg %p24
      %p31 = scmp.eq.s32.totalorder %s15, 1
      %p32 = por %p30, %p31
      %p33 = scmp.ne.s32.totalorder %s25, %s28
      %p34 = scmp.eq.s32.totalorder %s15, 0
      %p35 = por %p33, %p34
      %p36 = scmp.ne.s32.totalorder %s25, %s28
      %p37 = scmp.eq.s32.totalorder %s20, 1
      %p38 = por %p36, %p37
      %p39 = scmp.ne.s32.totalorder %s28, %s29
      %p40 = scmp.eq.s32.totalorder %s20, 0
      %p41 = por %p39, %p40
      %p42 = scmp.ne.s32.totalorder %s28, %s29
      %p43 = scmp.eq.s32.totalorder %s21, 1
      %p44 = por %p42, %p43
      %p46 = scmp.ne.s32.totalorder %s29, %s45
      %p47 = scmp.eq.s32.totalorder %s21, 0
      %p48 = por %p46, %p47
      %s49 = ssub.s32 %s15, %s22
      %p50 = scmp.eq.s32.totalorder %s49, 0
      %s52 = sadd.s32 %s51, 1
      %s53 = scalar_select %p50, %s51, %s52
      %p56 = pneg %p50
      %p57 = scmp.eq.s32.totalorder %s15, 1
      %p58 = por %p56, %p57
      %p59 = scmp.ne.s32.totalorder %s51, %s54
      %p60 = scmp.eq.s32.totalorder %s15, 0
      %p61 = por %p59, %p60
      %p62 = scmp.ne.s32.totalorder %s51, %s54
      %p63 = scmp.eq.s32.totalorder %s20, 1
      %p64 = por %p62, %p63
      %p65 = scmp.ne.s32.totalorder %s54, %s55
      %p66 = scmp.eq.s32.totalorder %s20, 0
      %p67 = por %p65, %p66
      %p68 = scmp.ne.s32.totalorder %s54, %s55
      %p69 = scmp.eq.s32.totalorder %s21, 1
      %p70 = por %p68, %p69
      %p72 = scmp.ne.s32.totalorder %s55, %s71
      %p73 = scmp.eq.s32.totalorder %s21, 0
      %p74 = por %p72, %p73
      %s76 = sadd.s32 %s75, 1
      %p79 = scmp.eq.s32.totalorder %s15, 1
      %p80 = scmp.ne.s32.totalorder %s75, %s77
      %p81 = scmp.eq.s32.totalorder %s15, 0
      %p82 = por %p80, %p81
      %p83 = scmp.ne.s32.totalorder %s75, %s77
      %p84 = scmp.eq.s32.totalorder %s20, 1
      %p85 = por %p83, %p84
      %p86 = scmp.ne.s32.totalorder %s77, %s78
      %p87 = scmp.eq.s32.totalorder %s20, 0
      %p88 = por %p86, %p87
      %p89 = scmp.ne.s32.totalorder %s77, %s78
      %p90 = scmp.eq.s32.totalorder %s21, 1
      %p91 = por %p89, %p90
      %p93 = scmp.ne.s32.totalorder %s78, %s92
      %p94 = scmp.eq.s32.totalorder %s21, 0
      %p95 = por %p93, %p94
      %s97 = sadd.s32 %s96, 1
      %p100 = scmp.eq.s32.totalorder %s15, 1
      %p101 = scmp.ne.s32.totalorder %s96, %s98
      %p102 = scmp.eq.s32.totalorder %s15, 0
      %p103 = por %p101, %p102
      %p104 = scmp.ne.s32.totalorder %s96, %s98
      %p105 = scmp.eq.s32.totalorder %s20, 1
      %p106 = por %p104, %p105
      %p107 = scmp.ne.s32.totalorder %s98, %s99
      %p108 = scmp.eq.s32.totalorder %s20, 0
      %p109 = por %p107, %p108
      %p110 = scmp.ne.s32.totalorder %s98, %s99
      %p111 = scmp.eq.s32.totalorder %s21, 1
      %p112 = por %p110, %p111
      %p114 = scmp.ne.s32.totalorder %s99, %s113
      %p115 = scmp.eq.s32.totalorder %s21, 0
      %p116 = por %p114, %p115
      %s118 = sadd.s32 %s117, 1
      %p121 = scmp.eq.s32.totalorder %s15, 1
      %p122 = scmp.ne.s32.totalorder %s117, %s119
      %p123 = scmp.eq.s32.totalorder %s15, 0
      %p124 = por %p122, %p123
      %p125 = scmp.ne.s32.totalorder %s117, %s119
      %p126 = scmp.eq.s32.totalorder %s20, 1
      %p127 = por %p125, %p126
      %p128 = scmp.ne.s32.totalorder %s119, %s120
      %p129 = scmp.eq.s32.totalorder %s20, 0
      %p130 = por %p128, %p129
      %p131 = scmp.ne.s32.totalorder %s119, %s120
      %p132 = scmp.eq.s32.totalorder %s21, 1
      %p133 = por %p131, %p132
      %p135 = scmp.ne.s32.totalorder %s120, %s134
      %p136 = scmp.eq.s32.totalorder %s21, 0
      %p137 = por %p135, %p136
      %s139 = sadd.s32 %s138, 1
      %p142 = scmp.eq.s32.totalorder %s15, 1
      %p143 = scmp.ne.s32.totalorder %s138, %s140
      %p144 = scmp.eq.s32.totalorder %s15, 0
      %p145 = por %p143, %p144
      %p146 = scmp.ne.s32.totalorder %s138, %s140
      %p147 = scmp.eq.s32.totalorder %s20, 1
      %p148 = por %p146, %p147
      %p149 = scmp.ne.s32.totalorder %s140, %s141
      %p150 = scmp.eq.s32.totalorder %s20, 0
      %p151 = por %p149, %p150
      %p152 = scmp.ne.s32.totalorder %s140, %s141
      %p153 = scmp.eq.s32.totalorder %s21, 1
      %p154 = por %p152, %p153
      %p156 = scmp.ne.s32.totalorder %s141, %s155
      %p157 = scmp.eq.s32.totalorder %s21, 0
      %p158 = por %p156, %p157
      %s160 = sadd.s32 %s159, 1
      %p163 = scmp.eq.s32.totalorder %s15, 1
      %p164 = scmp.ne.s32.totalorder %s159, %s161
      %p165 = scmp.eq.s32.totalorder %s15, 0
      %p166 = por %p164, %p165
      %p167 = scmp.ne.s32.totalorder %s159, %s161
      %p168 = scmp.eq.s32.totalorder %s20, 1
      %p169 = por %p167, %p168
      %p170 = scmp.ne.s32.totalorder %s161, %s162
      %p171 = scmp.eq.s32.totalorder %s20, 0
      %p172 = por %p170, %p171
      %p173 = scmp.ne.s32.totalorder %s161, %s162
      %p174 = scmp.eq.s32.totalorder %s21, 1
      %p175 = por %p173, %p174
      %p177 = scmp.ne.s32.totalorder %s162, %s176
      %p178 = scmp.eq.s32.totalorder %s21, 0
      %p179 = por %p177, %p178
      %s181 = sadd.s32 %s180, 1
      %p184 = scmp.eq.s32.totalorder %s15, 1
      %p185 = scmp.ne.s32.totalorder %s180, %s182
      %p186 = scmp.eq.s32.totalorder %s15, 0
      %p187 = por %p185, %p186
      %p188 = scmp.ne.s32.totalorder %s180, %s182
      %p189 = scmp.eq.s32.totalorder %s20, 1
      %p190 = por %p188, %p189
      %p191 = scmp.ne.s32.totalorder %s182, %s183
      %p192 = scmp.eq.s32.totalorder %s20, 0
      %p193 = por %p191, %p192
      %p194 = scmp.ne.s32.totalorder %s182, %s183
      %p195 = scmp.eq.s32.totalorder %s21, 1
      %p196 = por %p194, %p195
      %p198 = scmp.ne.s32.totalorder %s183, %s197
      %p199 = scmp.eq.s32.totalorder %s21, 0
      %p200 = por %p198, %p199
      %s201 = ssub.s32 %s15, %s22
      %p202 = scmp.eq.s32.totalorder %s201, 0
      %s204 = sadd.s32 %s203, 1
      %s205 = scalar_select %p202, %s203, %s204
      %p208 = pneg %p202
      %p209 = scmp.eq.s32.totalorder %s15, 1
      %p210 = por %p208, %p209
      %p211 = scmp.ne.s32.totalorder %s203, %s206
      %p212 = scmp.eq.s32.totalorder %s15, 0
      %p213 = por %p211, %p212
      %p214 = scmp.ne.s32.totalorder %s203, %s206
      %p215 = scmp.eq.s32.totalorder %s20, 1
      %p216 = por %p214, %p215
      %p217 = scmp.ne.s32.totalorder %s206, %s207
      %p218 = scmp.eq.s32.totalorder %s20, 0
      %p219 = por %p217, %p218
      %p220 = scmp.ne.s32.totalorder %s206, %s207
      %p221 = scmp.eq.s32.totalorder %s21, 1
      %p222 = por %p220, %p221
      %p224 = scmp.ne.s32.totalorder %s207, %s223
      %p225 = scmp.eq.s32.totalorder %s21, 0
      %p226 = por %p224, %p225
      %p227 = scmp.le.s32.totalorder 1, %s15
      %p228 = scmp.lt.s32.totalorder %s15, 3
      %p229 = pnand %p227, %p228
      %p230 = pneg %p229
      // Predicated region
      $region9: #{cif_block_apply.1} parent=5 // pred_check
        _
      $region10: #{cif_block_apply.1} parent=5 // pred_check_branch
        %232 = sbr.rel (%p229) target = $region12
      $region11: #{cif_block_apply.1} parent=5 // pred_region
        %s233 = ssub.s32 %s15, 1
        // Predicated region
        $region13: #{cif_block_apply.1} parent=11 // pred_check
          %p234 = pneg %p88
        $region14: #{cif_block_apply.1} parent=11 // pred_check_branch
          %236 = sbr.rel (%p234) target = $region16
        $region15: #{cif_block_apply.1} parent=11 // pred_region
          _
        $region16: #{cif_block_apply.1} parent=11 // pred_fallthru
          _
        // Predicated region
        $region17: #{cif_block_apply.1} parent=11 // pred_check
          %p237 = pneg %p109
        $region18: #{cif_block_apply.1} parent=11 // pred_check_branch
          %239 = sbr.rel (%p237) target = $region20
        $region19: #{cif_block_apply.1} parent=11 // pred_region
          _
        $region20: #{cif_block_apply.1} parent=11 // pred_fallthru
          _
        // Predicated region
        $region21: #{cif_block_apply.1} parent=11 // pred_check
          %p240 = pneg %p130
        $region22: #{cif_block_apply.1} parent=11 // pred_check_branch
          %242 = sbr.rel (%p240) target = $region24
        $region23: #{cif_block_apply.1} parent=11 // pred_region
          _
        $region24: #{cif_block_apply.1} parent=11 // pred_fallthru
          _
        // Predicated region
        $region25: #{cif_block_apply.1} parent=11 // pred_check
          %p243 = pneg %p151
        $region26: #{cif_block_apply.1} parent=11 // pred_check_branch
          %245 = sbr.rel (%p243) target = $region28
        $region27: #{cif_block_apply.1} parent=11 // pred_region
          %247 = vsyncadd [#allocation3], 0
          %s248 = sshll.u32 %s5, 4
          %s249 = int_to_ptr.vmem [resolvable:$true] %s248
          %254 = dma.vmem_to_smem %s249, 256, [#allocation2], [#allocation3], 128, 128, 8
        $region28: #{cif_block_apply.1} parent=11 // pred_fallthru
          _
        // Predicated region
        $region29: #{cif_block_apply.1} parent=11 // pred_check
          %p255 = pneg %p172
        $region30: #{cif_block_apply.1} parent=11 // pred_check_branch
          %257 = sbr.rel (%p255) target = $region32
        $region31: #{cif_block_apply.1} parent=11 // pred_region
          _
        $region32: #{cif_block_apply.1} parent=11 // pred_fallthru
          _
        // Predicated region
        $region33: #{cif_block_apply.1} parent=11 // pred_check
          %p258 = pneg %p193
        $region34: #{cif_block_apply.1} parent=11 // pred_check_branch
          %260 = sbr.rel (%p258) target = $region36
        $region35: #{cif_block_apply.1} parent=11 // pred_region
          _
        $region36: #{cif_block_apply.1} parent=11 // pred_fallthru
          _
      $region12: #{cif_block_apply.1} parent=5 // pred_fallthru
        _
      %p261 = scmp.lt.s32.totalorder %s15, 2
      // Predicated region
      $region37: #{cif_block_apply.1} parent=5 // pred_check
        %p262 = pneg %p261
      $region38: #{cif_block_apply.1} parent=5 // pred_check_branch
        %264 = sbr.rel (%p262) target = $region40
      $region39: #{cif_block_apply.1} parent=5 // pred_region
        // Predicated region
        $region41: #{cif_block_apply.1} parent=39 // pred_check
          %p265 = pneg %p35
        $region42: #{cif_block_apply.1} parent=39 // pred_check_branch
          %267 = sbr.rel (%p265) target = $region44
        $region43: #{cif_block_apply.1} parent=39 // pred_region
          %p268 = scmp.lt.s32.totalorder %s15, 1
          %s269 = scalar_select %p268, %s15, 1
          %s270 = smul.addr %s269, 8
          %s271 = smul.addr %s270, 8
          %s272 = scalar_lea.vmem %s0, %s271
        $region44: #{cif_block_apply.1} parent=39 // pred_fallthru
          _
        // Predicated region
        $region45: #{cif_block_apply.1} parent=39 // pred_check
          %p273 = pneg %p61
        $region46: #{cif_block_apply.1} parent=39 // pred_check_branch
          %275 = sbr.rel (%p273) target = $region48
        $region47: #{cif_block_apply.1} parent=39 // pred_region
          %p276 = scmp.lt.s32.totalorder %s15, 1
          %s277 = scalar_select %p276, %s15, 1
          %s278 = smul.addr %s277, 8
          %s279 = smul.addr %s278, 8
          %s280 = scalar_lea.vmem %s1, %s279
        $region48: #{cif_block_apply.1} parent=39 // pred_fallthru
          _
      $region40: #{cif_block_apply.1} parent=5 // pred_fallthru
        _
      %p281 = scmp.le.s32.totalorder 1, %s15
      %p282 = scmp.lt.s32.totalorder %s15, 3
      %p283 = pnand %p281, %p282
      %p284 = pneg %p283
      // Predicated region
      $region49: #{cif_block_apply.1} parent=5 // pred_check
        _
      $region50: #{cif_block_apply.1} parent=5 // pred_check_branch
        %286 = sbr.rel (%p283) target = $region52
      $region51: #{cif_block_apply.1} parent=5 // pred_region
        %s287 = ssub.s32 %s15, 1
        // Predicated region
        $region53: #{cif_block_apply.1} parent=51 // pred_check
          %p288 = pneg %p151
        $region54: #{cif_block_apply.1} parent=51 // pred_check_branch
          %290 = sbr.rel (%p288) target = $region56
        $region55: #{cif_block_apply.1} parent=51 // pred_region
          %292 = dma.done [#allocation3], 256
        $region56: #{cif_block_apply.1} parent=51 // pred_fallthru
          _
        %293 = sfence
        %p294 = scmp.lt.s32.totalorder %s20, 1
        %s295 = scalar_select %p294, %s20, 1
        %s296 = smul.addr %s295, 8
        %s297 = smul.addr %s296, 8
        %s298 = scalar_lea.vmem %s0, %s297
        %p299 = pneg %p41
        %p300 = pneg %p38
        %p301 = scmp.lt.s32.totalorder %s20, 1
        %s302 = scalar_select %p301, %s20, 1
        %s303 = smul.addr %s302, 8
        %s304 = smul.addr %s303, 8
        %s305 = scalar_lea.vmem %s1, %s304
        %p306 = pneg %p67
        %p307 = pneg %p64
        %p308 = pneg %p88
        %p309 = pneg %p85
        %p310 = pneg %p109
        %p311 = pneg %p106
        %p312 = pneg %p130
        %p313 = pneg %p127
        %p314 = pneg %p151
        %p315 = pneg %p148
        %p316 = pneg %p172
        %p317 = pneg %p169
        %p318 = pneg %p193
        %p319 = pneg %p190
        %p320 = pneg %p219
        %p321 = pneg %p216
        %p322 = scmp.lt.s32.totalorder %s20, 1
        %s323 = scalar_select %p322, %s20, 1
        %s324 = smul.addr %s323, 8
        %s325 = smul.addr %s324, 8
        %s326 = scalar_lea.vmem %s8, %s325
        %p327 = scmp.lt.s32.totalorder %s20, 1
        %s328 = scalar_select %p327, %s20, 1
        %s329 = smul.addr %s328, 8
        %s330 = smul.addr %s329, 8
        %s331 = scalar_lea.vmem %s0, %s330
        %p332 = scmp.lt.s32.totalorder %s20, 1
        %s333 = scalar_select %p332, %s20, 1
        %s334 = smul.addr %s333, 8
        %s335 = smul.addr %s334, 8
        %s336 = scalar_lea.vmem %s1, %s335
        %p337 = scmp.lt.s32.totalorder %s20, 1
        %s338 = scalar_select %p337, %s20, 1
        %s339 = smul.addr %s338, 8
        %s340 = smul.addr %s339, 8
        %s341 = scalar_lea.vmem %s8, %s340
        %v342 = vld [vmem:[%s2] sm:$0xff]
        %v343 = vld [vmem:[%s2 + $0x8] sm:$0xff]
        %v344 = vld [vmem:[%s2 + $0x10] sm:$0xff]
        %v345 = vld [vmem:[%s2 + $0x18] sm:$0xff]
        %v346 = vld [vmem:[%s3] sm:$0xff]
        %v347 = vld [vmem:[%s3 + $0x8] sm:$0xff]
        %v348 = vld [vmem:[%s3 + $0x10] sm:$0xff]
        %v349 = vld [vmem:[%s3 + $0x18] sm:$0xff]
        %v350 = vld [vmem:[%s4] sm:$0xff]
        %v351 = vld [vmem:[%s4 + $0x8] sm:$0xff]
        %v352 = vld [vmem:[%s4 + $0x10] sm:$0xff]
        %v353 = vld [vmem:[%s4 + $0x18] sm:$0xff]
        %v354 = vld [vmem:[%s6] sm:$0x3]
        %v355 = vld [vmem:[%s7] sm:$0xff]
        %v356 = vld [vmem:[%s7 + $0x8] sm:$0xff]
        %v357 = vld [vmem:[%s7 + $0x10] sm:$0xff]
        %v358 = vld [vmem:[%s7 + $0x18] sm:$0xff]
        %s359 = sld [smem:[#allocation2]]
        %s360 = sld [smem:[#allocation2 + $0x1]]
        %s361 = sld [smem:[#allocation2 + $0x80]]
        %s362 = sld [smem:[#allocation2 + $0x81]]
        %s363 = sld [smem:[#allocation2 + $0x100]]
        %s364 = sld [smem:[#allocation2 + $0x101]]
        %s365 = sld [smem:[#allocation2 + $0x180]]
        %s366 = sld [smem:[#allocation2 + $0x181]]
        %s367 = sld [smem:[#allocation2 + $0x200]]
        %s368 = sld [smem:[#allocation2 + $0x201]]
        %s369 = sld [smem:[#allocation2 + $0x280]]
        %s370 = sld [smem:[#allocation2 + $0x281]]
        %s371 = sld [smem:[#allocation2 + $0x300]]
        %s372 = sld [smem:[#allocation2 + $0x301]]
        %s373 = sld [smem:[#allocation2 + $0x380]]
        %s374 = sld [smem:[#allocation2 + $0x381]]
        %s375 = sld [smem:[#allocation2 + $0x400]]
        %s376 = sld [smem:[#allocation2 + $0x401]]
        %v377 = vlaneseq
        %v378 = vand.u32 %v377, 127
        %v379 = vadd.s32 %v378, 128
        %v380 = vcvt.s32.f32 %v378
        %v381 = vcvt.s32.f32 %v379
        %v382 = vrcp.pop 16.0
        %v383 = vmul.f32 16.0, %v382
        %v384 = vsub.f32 1.0, %v383
        %v385 = vmul.f32 %v382, %v384
        %v386 = vadd.f32 %v382, %v385
        %vm387 = vweird.f32 %v382
        %v388 = vsel %vm387, %v382, %v386
        %v389 = vmul.f32 %v380, %v388
        %v390 = vmul.f32 %v381, %v388
        %v391 = vfloor.f32 %v389
        %v392 = vfloor.f32 %v390
        %v393 = vmul.f32 %v391, 16.0
        %v394 = vmul.f32 %v392, 16.0
        %v395 = vsub.f32 %v380, %v393
        %v396 = vsub.f32 %v381, %v394
        %vm397 = vcmp.gt.f32.partialorder %v395, 0.5
        %vm398 = vcmp.gt.f32.partialorder %v396, 0.5
        %v399 = vsel %vm397, 1.0, 0.0
        %v400 = vsel %vm398, 1.0, 0.0
        %vm401 = vcmp.lt.f32.partialorder %v395, 14.5
        %vm402 = vcmp.lt.f32.partialorder %v396, 14.5
        %v403 = vsel %vm401, 1.0, 0.0
        %v404 = vsel %vm402, 1.0, 0.0
        %vm405 = vcmp.ge.s32.totalorder %v378, 16
        %vm406 = vcmp.ge.s32.totalorder %v379, 16
        %v407 = vsel %vm405, 1.0, 0.0
        %v408 = vsel %vm406, 1.0, 0.0
        %vm409 = vcmp.lt.s32.totalorder %v378, 240
        %vm410 = vcmp.lt.s32.totalorder %v379, 240
        %v411 = vsel %vm409, 1.0, 0.0
        %v412 = vsel %vm410, 1.0, 0.0
        %v413 = vmul.f32 %v399, %v407
        %v414 = vmul.f32 %v400, %v408
        %v415 = vmul.f32 %v403, %v407
        %v416 = vmul.f32 %v404, %v408
        %v417 = vmul.f32 %v399, %v411
        %v418 = vmul.f32 %v400, %v412
        %v419 = vmul.f32 %v403, %v411
        %v420 = vmul.f32 %v404, %v412
        %v421 = vld [vmem:[%s331] sm:$0xff]
        %v422 = vld [vmem:[%s331 + $0x8] sm:$0xff]
        %v423 = vld [vmem:[%s331 + $0x10] sm:$0xff]
        %v424 = vld [vmem:[%s331 + $0x18] sm:$0xff]
        %v425 = vld [vmem:[%s331 + $0x20] sm:$0xff]
        %v426 = vld [vmem:[%s331 + $0x28] sm:$0xff]
        %v427 = vld [vmem:[%s331 + $0x30] sm:$0xff]
        %v428 = vld [vmem:[%s331 + $0x38] sm:$0xff]
        %v429 = vld [vmem:[%s336] sm:$0xff]
        %v430 = vld [vmem:[%s336 + $0x8] sm:$0xff]
        %v431 = vld [vmem:[%s336 + $0x10] sm:$0xff]
        %v432 = vld [vmem:[%s336 + $0x18] sm:$0xff]
        %v433 = vld [vmem:[%s336 + $0x20] sm:$0xff]
        %v434 = vld [vmem:[%s336 + $0x28] sm:$0xff]
        %v435 = vld [vmem:[%s336 + $0x30] sm:$0xff]
        %v436 = vld [vmem:[%s336 + $0x38] sm:$0xff]
        %vm437 = vcmask 261120
        %v439 = vsel %vm437, %v346, 0
        %v442 = vsel %vm437, %v347, 0
        %v445 = vsel %vm437, %v348, 0
        %v448 = vsel %vm437, %v349, 0
        %450 = vmatpush.msra.mxu0 0.0
        %451 = vmatpush.msra.mxu0 0.0
        %452 = vmatpush.msra.mxu0 0.0
        %453 = vmatpush.msra.mxu0 0.0
        %454 = vmatpush.msra.mxu0 0.0
        %455 = vmatpush.msra.mxu0 0.0
        %456 = vmatpush.msra.mxu0 0.0
        %457 = vmatpush.msra.mxu0 0.0
        %458 = vmatpush.msra.mxu0 0.0
        %459 = vmatpush.msra.mxu0 0.0
        %460 = vmatpush.msra.mxu0 0.0
        %461 = vmatpush.msra.mxu0 0.0
        %462 = vmatpush.msra.mxu0 %v435
        %463 = vmatpush.msra.mxu0 %v433
        %464 = vmatpush.msra.mxu0 %v431
        %465 = vmatpush.msra.mxu0 %v429
        %466 = vmatmul.f32.gmra.mxu0 %v439
        %v467 = vpop.f32.mrf.mxu0
        %v468 = vadd.f32 0.0, %v467
        %469 = vmatmul.f32.gmra.mxu0 %v442
        %v470 = vpop.f32.mrf.mxu0
        %v471 = vadd.f32 0.0, %v470
        %472 = vmatmul.f32.gmra.mxu0 %v445
        %v473 = vpop.f32.mrf.mxu0
        %v474 = vadd.f32 0.0, %v473
        %475 = vmatmul.f32.gmra.mxu0 %v448
        %v476 = vpop.f32.mrf.mxu0
        %v477 = vadd.f32 0.0, %v476
        %478 = vdwg.mxu0
        %479 = vmatpush.msra.mxu0 0.0
        %480 = vmatpush.msra.mxu0 0.0
        %481 = vmatpush.msra.mxu0 0.0
        %482 = vmatpush.msra.mxu0 0.0
        %483 = vmatpush.msra.mxu0 0.0
        %484 = vmatpush.msra.mxu0 0.0
        %485 = vmatpush.msra.mxu0 0.0
        %486 = vmatpush.msra.mxu0 0.0
        %487 = vmatpush.msra.mxu0 0.0
        %488 = vmatpush.msra.mxu0 0.0
        %489 = vmatpush.msra.mxu0 0.0
        %490 = vmatpush.msra.mxu0 0.0
        %491 = vmatpush.msra.mxu0 %v436
        %492 = vmatpush.msra.mxu0 %v434
        %493 = vmatpush.msra.mxu0 %v432
        %494 = vmatpush.msra.mxu0 %v430
        %495 = vmatmul.f32.gmra.mxu0 %v439
        %v496 = vpop.f32.mrf.mxu0
        %v497 = vadd.f32 0.0, %v496
        %498 = vmatmul.f32.gmra.mxu0 %v442
        %v499 = vpop.f32.mrf.mxu0
        %v500 = vadd.f32 0.0, %v499
        %501 = vmatmul.f32.gmra.mxu0 %v445
        %v502 = vpop.f32.mrf.mxu0
        %v503 = vadd.f32 0.0, %v502
        %504 = vmatmul.f32.gmra.mxu0 %v448
        %v505 = vpop.f32.mrf.mxu0
        %v506 = vadd.f32 0.0, %v505
        %507 = vdwg.mxu0
        %v509 = vsel %vm437, %v342, 0
        %v512 = vsel %vm437, %v343, 0
        %v515 = vsel %vm437, %v344, 0
        %v518 = vsel %vm437, %v345, 0
        %520 = vmatpush.msra.mxu0 0.0
        %521 = vmatpush.msra.mxu0 0.0
        %522 = vmatpush.msra.mxu0 0.0
        %523 = vmatpush.msra.mxu0 0.0
        %524 = vmatpush.msra.mxu0 0.0
        %525 = vmatpush.msra.mxu0 0.0
        %526 = vmatpush.msra.mxu0 0.0
        %527 = vmatpush.msra.mxu0 0.0
        %528 = vmatpush.msra.mxu0 0.0
        %529 = vmatpush.msra.mxu0 0.0
        %530 = vmatpush.msra.mxu0 0.0
        %531 = vmatpush.msra.mxu0 0.0
        %532 = vmatpush.msra.mxu0 %v427
        %533 = vmatpush.msra.mxu0 %v425
        %534 = vmatpush.msra.mxu0 %v423
        %535 = vmatpush.msra.mxu0 %v421
        %536 = vmatmul.f32.gmra.mxu0 %v509
        %v537 = vpop.f32.mrf.mxu0
        %v538 = vadd.f32 %v468, %v537
        %539 = vmatmul.f32.gmra.mxu0 %v512
        %v540 = vpop.f32.mrf.mxu0
        %v541 = vadd.f32 %v471, %v540
        %542 = vmatmul.f32.gmra.mxu0 %v515
        %v543 = vpop.f32.mrf.mxu0
        %v544 = vadd.f32 %v474, %v543
        %545 = vmatmul.f32.gmra.mxu0 %v518
        %v546 = vpop.f32.mrf.mxu0
        %v547 = vadd.f32 %v477, %v546
        %548 = vdwg.mxu0
        %549 = vmatpush.msra.mxu0 0.0
        %550 = vmatpush.msra.mxu0 0.0
        %551 = vmatpush.msra.mxu0 0.0
        %552 = vmatpush.msra.mxu0 0.0
        %553 = vmatpush.msra.mxu0 0.0
        %554 = vmatpush.msra.mxu0 0.0
        %555 = vmatpush.msra.mxu0 0.0
        %556 = vmatpush.msra.mxu0 0.0
        %557 = vmatpush.msra.mxu0 0.0
        %558 = vmatpush.msra.mxu0 0.0
        %559 = vmatpush.msra.mxu0 0.0
        %560 = vmatpush.msra.mxu0 0.0
        %561 = vmatpush.msra.mxu0 %v428
        %562 = vmatpush.msra.mxu0 %v426
        %563 = vmatpush.msra.mxu0 %v424
        %564 = vmatpush.msra.mxu0 %v422
        %565 = vmatmul.f32.gmra.mxu0 %v509
        %v566 = vpop.f32.mrf.mxu0
        %v567 = vadd.f32 %v497, %v566
        %568 = vmatmul.f32.gmra.mxu0 %v512
        %v569 = vpop.f32.mrf.mxu0
        %v570 = vadd.f32 %v500, %v569
        %571 = vmatmul.f32.gmra.mxu0 %v515
        %v572 = vpop.f32.mrf.mxu0
        %v573 = vadd.f32 %v503, %v572
        %574 = vmatmul.f32.gmra.mxu0 %v518
        %v575 = vpop.f32.mrf.mxu0
        %v576 = vadd.f32 %v506, %v575
        %577 = vdwg.mxu0
        %579 = vset.pattern.permute.xlu0 0
        %580 = vperm.xlu0 %579, %v350
        %v581 = vpop.permute.xlu0 %580
        %584 = vset.pattern.permute.xlu0 0
        %585 = vperm.xlu0 %584, %v351
        %v586 = vpop.permute.xlu0 %585
        %589 = vset.pattern.permute.xlu0 0
        %590 = vperm.xlu0 %589, %v352
        %v591 = vpop.permute.xlu0 %590
        %594 = vset.pattern.permute.xlu0 0
        %595 = vperm.xlu0 %594, %v353
        %v596 = vpop.permute.xlu0 %595
        %v598 = vadd.f32 %v538, %v581
        %v599 = vadd.f32 %v567, %v581
        %v600 = vadd.f32 %v541, %v586
        %v601 = vadd.f32 %v570, %v586
        %v602 = vadd.f32 %v544, %v591
        %v603 = vadd.f32 %v573, %v591
        %v604 = vadd.f32 %v547, %v596
        %v605 = vadd.f32 %v576, %v596
        %v606 = vadd.f32 %v598, %v600
        %v607 = vadd.f32 %v606, %v602
        %v608 = vadd.f32 %v607, %v604
        %v609 = vrot.slane %v608, 4
        %v610 = vadd.f32 %v608, %v609
        %v611 = vrot.slane %v610, 2
        %v612 = vadd.f32 %v610, %v611
        %v613 = vrot.slane %v612, 1
        %v614 = vadd.f32 %v612, %v613
        %v615 = vadd.f32 %v599, %v601
        %v616 = vadd.f32 %v615, %v603
        %v617 = vadd.f32 %v616, %v605
        %v618 = vrot.slane %v617, 4
        %v619 = vadd.f32 %v617, %v618
        %v620 = vrot.slane %v619, 2
        %v621 = vadd.f32 %v619, %v620
        %v622 = vrot.slane %v621, 1
        %v623 = vadd.f32 %v621, %v622
        %v624 = vrcp.pop 32.0
        %v625 = vmul.f32 32.0, %v624
        %v626 = vsub.f32 1.0, %v625
        %v627 = vmul.f32 %v624, %v626
        %v628 = vadd.f32 %v624, %v627
        %vm629 = vweird.f32 %v624
        %v630 = vsel %vm629, %v624, %v628
        %v631 = vmul.f32 %v614, %v630
        %v632 = vmul.f32 %v623, %v630
        %v633 = vmax.f32 %v598, %v602
        %v634 = vmax.f32 %v600, %v604
        %v635 = vmax.f32 %v633, %v634
        %v636 = vrot.slane %v635, 4
        %v637 = vmax.f32 %v635, %v636
        %v638 = vrot.slane %v637, 2
        %v639 = vmax.f32 %v637, %v638
        %v640 = vrot.slane %v639, 1
        %v641 = vmax.f32 %v639, %v640
        %v642 = vmax.f32 %v599, %v603
        %v643 = vmax.f32 %v601, %v605
        %v644 = vmax.f32 %v642, %v643
        %v645 = vrot.slane %v644, 4
        %v646 = vmax.f32 %v644, %v645
        %v647 = vrot.slane %v646, 2
        %v648 = vmax.f32 %v646, %v647
        %v649 = vrot.slane %v648, 1
        %v650 = vmax.f32 %v648, %v649
        %vm651 = vcmask 1040384
        %v652 = vsel %vm651, %v631, %v641
        %v653 = vsel %vm651, %v632, %v650
        %v654 = vstv %s367
        %v655 = vmul.f32 %v654, %v652
        %v656 = vmul.f32 %v654, %v653
        %v657 = vstv %s368
        %v658 = vmul.f32 %v657, %v652
        %v659 = vmul.f32 %v657, %v653
        %v662 = vrot.slane %v658, 1
        %v663 = vrot.slane %v659, 1
        %v666 = vadd.f32 %v655, %v662
        %v667 = vadd.f32 %v656, %v663
        %668 = vrot.lane.b32.xlu0 %v652, 17
        %v669 = vpop.permute.xlu0 %668
        %670 = vrot.lane.b32.xlu0 %v653, 17
        %v671 = vpop.permute.xlu0 %670
        %vm672 = vcmp.lt.s32.totalorder %v378, 17
        %v673 = vsel %vm672, %v669, %v671
        %v674 = vsel %vm672, %v671, %v669
        %v675 = vstv %s359
        %v676 = vmul.f32 %v675, %v674
        %v677 = vmul.f32 %v675, %v673
        %v678 = vstv %s360
        %v679 = vmul.f32 %v678, %v674
        %v680 = vmul.f32 %v678, %v673
        %v683 = vrot.slane %v679, 1
        %v684 = vrot.slane %v680, 1
        %v687 = vadd.f32 %v676, %v683
        %v688 = vadd.f32 %v677, %v684
        %v689 = vmul.f32 %v687, %v413
        %v690 = vmul.f32 %v688, %v414
        %v691 = vadd.f32 %v666, %v689
        %v692 = vadd.f32 %v667, %v690
        %693 = vrot.lane.b32.xlu0 %v652, 16
        %v694 = vpop.permute.xlu0 %693
        %695 = vrot.lane.b32.xlu0 %v653, 16
        %v696 = vpop.permute.xlu0 %695
        %vm697 = vcmp.lt.s32.totalorder %v378, 16
        %v698 = vsel %vm697, %v694, %v696
        %v699 = vsel %vm697, %v696, %v694
        %v700 = vstv %s361
        %v701 = vmul.f32 %v700, %v699
        %v702 = vmul.f32 %v700, %v698
        %v703 = vstv %s362
        %v704 = vmul.f32 %v703, %v699
        %v705 = vmul.f32 %v703, %v698
        %v708 = vrot.slane %v704, 1
        %v709 = vrot.slane %v705, 1
        %v712 = vadd.f32 %v701, %v708
        %v713 = vadd.f32 %v702, %v709
        %v714 = vmul.f32 %v712, %v407
        %v715 = vmul.f32 %v713, %v408
        %v716 = vadd.f32 %v691, %v714
        %v717 = vadd.f32 %v692, %v715
        %718 = vrot.lane.b32.xlu0 %v652, 15
        %v719 = vpop.permute.xlu0 %718
        %720 = vrot.lane.b32.xlu0 %v653, 15
        %v721 = vpop.permute.xlu0 %720
        %vm722 = vcmp.lt.s32.totalorder %v378, 15
        %v723 = vsel %vm722, %v719, %v721
        %v724 = vsel %vm722, %v721, %v719
        %v725 = vstv %s363
        %v726 = vmul.f32 %v725, %v724
        %v727 = vmul.f32 %v725, %v723
        %v728 = vstv %s364
        %v729 = vmul.f32 %v728, %v724
        %v730 = vmul.f32 %v728, %v723
        %v733 = vrot.slane %v729, 1
        %v734 = vrot.slane %v730, 1
        %v737 = vadd.f32 %v726, %v733
        %v738 = vadd.f32 %v727, %v734
        %v739 = vmul.f32 %v737, %v415
        %v740 = vmul.f32 %v738, %v416
        %v741 = vadd.f32 %v716, %v739
        %v742 = vadd.f32 %v717, %v740
        %743 = vrot.lane.b32.xlu0 %v652, 1
        %v744 = vpop.permute.xlu0 %743
        %745 = vrot.lane.b32.xlu0 %v653, 1
        %v746 = vpop.permute.xlu0 %745
        %vm747 = vcmp.lt.s32.totalorder %v378, 1
        %v748 = vsel %vm747, %v744, %v746
        %v749 = vsel %vm747, %v746, %v744
        %v750 = vstv %s365
        %v751 = vmul.f32 %v750, %v749
        %v752 = vmul.f32 %v750, %v748
        %v753 = vstv %s366
        %v754 = vmul.f32 %v753, %v749
        %v755 = vmul.f32 %v753, %v748
        %v758 = vrot.slane %v754, 1
        %v759 = vrot.slane %v755, 1
        %v762 = vadd.f32 %v751, %v758
        %v763 = vadd.f32 %v752, %v759
        %v764 = vmul.f32 %v762, %v399
        %v765 = vmul.f32 %v763, %v400
        %v766 = vadd.f32 %v741, %v764
        %v767 = vadd.f32 %v742, %v765
        %768 = vrot.lane.b32.xlu0 %v652, 127
        %v769 = vpop.permute.xlu0 %768
        %770 = vrot.lane.b32.xlu0 %v653, 127
        %v771 = vpop.permute.xlu0 %770
        %vm772 = vcmp.lt.s32.totalorder %v378, 127
        %v773 = vsel %vm772, %v769, %v771
        %v774 = vsel %vm772, %v771, %v769
        %v775 = vstv %s369
        %v776 = vmul.f32 %v775, %v773
        %v777 = vmul.f32 %v775, %v774
        %v778 = vstv %s370
        %v779 = vmul.f32 %v778, %v773
        %v780 = vmul.f32 %v778, %v774
        %v783 = vrot.slane %v779, 1
        %v784 = vrot.slane %v780, 1
        %v787 = vadd.f32 %v776, %v783
        %v788 = vadd.f32 %v777, %v784
        %v789 = vmul.f32 %v787, %v403
        %v790 = vmul.f32 %v788, %v404
        %v791 = vadd.f32 %v766, %v789
        %v792 = vadd.f32 %v767, %v790
        %793 = vrot.lane.b32.xlu0 %v652, 113
        %v794 = vpop.permute.xlu0 %793
        %795 = vrot.lane.b32.xlu0 %v653, 113
        %v796 = vpop.permute.xlu0 %795
        %vm797 = vcmp.lt.s32.totalorder %v378, 113
        %v798 = vsel %vm797, %v794, %v796
        %v799 = vsel %vm797, %v796, %v794
        %v800 = vstv %s371
        %v801 = vmul.f32 %v800, %v798
        %v802 = vmul.f32 %v800, %v799
        %v803 = vstv %s372
        %v804 = vmul.f32 %v803, %v798
        %v805 = vmul.f32 %v803, %v799
        %v808 = vrot.slane %v804, 1
        %v809 = vrot.slane %v805, 1
        %v812 = vadd.f32 %v801, %v808
        %v813 = vadd.f32 %v802, %v809
        %v814 = vmul.f32 %v812, %v417
        %v815 = vmul.f32 %v813, %v418
        %v816 = vadd.f32 %v791, %v814
        %v817 = vadd.f32 %v792, %v815
        %818 = vrot.lane.b32.xlu0 %v652, 112
        %v819 = vpop.permute.xlu0 %818
        %820 = vrot.lane.b32.xlu0 %v653, 112
        %v821 = vpop.permute.xlu0 %820
        %vm822 = vcmp.lt.s32.totalorder %v378, 112
        %v823 = vsel %vm822, %v819, %v821
        %v824 = vsel %vm822, %v821, %v819
        %v825 = vstv %s373
        %v826 = vmul.f32 %v825, %v823
        %v827 = vmul.f32 %v825, %v824
        %v828 = vstv %s374
        %v829 = vmul.f32 %v828, %v823
        %v830 = vmul.f32 %v828, %v824
        %v833 = vrot.slane %v829, 1
        %v834 = vrot.slane %v830, 1
        %v837 = vadd.f32 %v826, %v833
        %v838 = vadd.f32 %v827, %v834
        %v839 = vmul.f32 %v837, %v411
        %v840 = vmul.f32 %v838, %v412
        %v841 = vadd.f32 %v816, %v839
        %v842 = vadd.f32 %v817, %v840
        %843 = vrot.lane.b32.xlu0 %v652, 111
        %v844 = vpop.permute.xlu0 %843
        %845 = vrot.lane.b32.xlu0 %v653, 111
        %v846 = vpop.permute.xlu0 %845
        %vm847 = vcmp.lt.s32.totalorder %v378, 111
        %v848 = vsel %vm847, %v844, %v846
        %v849 = vsel %vm847, %v846, %v844
        %v850 = vstv %s375
        %v851 = vmul.f32 %v850, %v848
        %v852 = vmul.f32 %v850, %v849
        %v853 = vstv %s376
        %v854 = vmul.f32 %v853, %v848
        %v855 = vmul.f32 %v853, %v849
        %v858 = vrot.slane %v854, 1
        %v859 = vrot.slane %v855, 1
        %v862 = vadd.f32 %v851, %v858
        %v863 = vadd.f32 %v852, %v859
        %v864 = vmul.f32 %v862, %v419
        %v865 = vmul.f32 %v863, %v420
        %v866 = vadd.f32 %v841, %v864
        %v867 = vadd.f32 %v842, %v865
        %v868 = vxor.u32 %v866, 2147483648
        %v869 = vxor.u32 %v867, 2147483648
        %v870 = vmul.f32 %v868, 1.442695
        %v871 = vpow.pop %v870
        %v872 = vmul.f32 %v869, 1.442695
        %v873 = vpow.pop %v872
        %v874 = vadd.f32 %v871, 1.0
        %v875 = vadd.f32 %v873, 1.0
        %v876 = vrcp.pop %v874
        %v877 = vmul.f32 %v874, %v876
        %v878 = vsub.f32 1.0, %v877
        %v879 = vmul.f32 %v876, %v878
        %v880 = vadd.f32 %v876, %v879
        %vm881 = vweird.f32 %v874
        %vm882 = vweird.f32 %v876
        %vm883 = vmor %vm881, %vm882
        %v884 = vsel %vm883, %v876, %v880
        %v885 = vand.u32 2147483647, %v874
        %vm886 = vcmp.eq.f32.partialorder %v885, 8.507059e+37
        %v887 = vand.u32 %v874, 2147483648
        %v888 = vor.u32 1.1754944e-38, %v887
        %v889 = vsel %vm886, %v888, %v884
        %v890 = vmul.f32 1.0, %v889
        %v891 = vrcp.pop %v875
        %v892 = vmul.f32 %v875, %v891
        %v893 = vsub.f32 1.0, %v892
        %v894 = vmul.f32 %v891, %v893
        %v895 = vadd.f32 %v891, %v894
        %vm896 = vweird.f32 %v875
        %vm897 = vweird.f32 %v891
        %vm898 = vmor %vm896, %vm897
        %v899 = vsel %vm898, %v891, %v895
        %v900 = vand.u32 2147483647, %v875
        %vm901 = vcmp.eq.f32.partialorder %v900, 8.507059e+37
        %v902 = vand.u32 %v875, 2147483648
        %v903 = vor.u32 1.1754944e-38, %v902
        %v904 = vsel %vm901, %v903, %v899
        %v905 = vmul.f32 1.0, %v904
        %v906 = vperm.slane %v890, 0
        %v907 = vperm.slane %v905, 0
        %v908 = vmul.f32 %v421, %v906
        %v909 = vmul.f32 %v422, %v907
        %v910 = vmul.f32 %v423, %v906
        %v911 = vmul.f32 %v424, %v907
        %v912 = vmul.f32 %v425, %v906
        %v913 = vmul.f32 %v426, %v907
        %v914 = vmul.f32 %v427, %v906
        %v915 = vmul.f32 %v428, %v907
        %v916 = vadd.f32 %v908, %v909
        %917 = vadd.xlane.f32.xlu0 %v916
        %v918 = vpop.xlane.xlu0 %917
        %v919 = vadd.f32 %v910, %v911
        %920 = vadd.xlane.f32.xlu0 %v919
        %v921 = vpop.xlane.xlu0 %920
        %v922 = vadd.f32 %v912, %v913
        %923 = vadd.xlane.f32.xlu0 %v922
        %v924 = vpop.xlane.xlu0 %923
        %v925 = vadd.f32 %v914, %v915
        %926 = vadd.xlane.f32.xlu0 %v925
        %v927 = vpop.xlane.xlu0 %926
        %v928 = vrcp.pop 256.0
        %v929 = vmul.f32 256.0, %v928
        %v930 = vsub.f32 1.0, %v929
        %v931 = vmul.f32 %v928, %v930
        %v932 = vadd.f32 %v928, %v931
        %vm933 = vweird.f32 %v928
        %v934 = vsel %vm933, %v928, %v932
        %v935 = vmul.f32 %v918, %v934
        %v936 = vmul.f32 %v921, %v934
        %v937 = vmul.f32 %v924, %v934
        %v938 = vmul.f32 %v927, %v934
        %v939 = vmax.f32 %v908, %v909
        %940 = vmax.xlane.f32.xlu0 %v939
        %v941 = vpop.xlane.xlu0 %940
        %v942 = vmax.f32 %v910, %v911
        %943 = vmax.xlane.f32.xlu0 %v942
        %v944 = vpop.xlane.xlu0 %943
        %v945 = vmax.f32 %v912, %v913
        %946 = vmax.xlane.f32.xlu0 %v945
        %v947 = vpop.xlane.xlu0 %946
        %v948 = vmax.f32 %v914, %v915
        %949 = vmax.xlane.f32.xlu0 %v948
        %v950 = vpop.xlane.xlu0 %949
        %vm951 = vcmask 7168
        %v952 = vsel %vm951, %v935, %v941
        %v953 = vsel %vm951, %v936, %v944
        %v954 = vsel %vm951, %v937, %v947
        %v955 = vsel %vm951, %v938, %v950
        %v957 = vsel %vm437, %v354, 0
        %959 = vmatpush.msra.mxu0 0.0
        %960 = vmatpush.msra.mxu0 0.0
        %961 = vmatpush.msra.mxu0 0.0
        %962 = vmatpush.msra.mxu0 0.0
        %963 = vmatpush.msra.mxu0 0.0
        %964 = vmatpush.msra.mxu0 0.0
        %965 = vmatpush.msra.mxu0 0.0
        %966 = vmatpush.msra.mxu0 0.0
        %967 = vmatpush.msra.mxu0 0.0
        %968 = vmatpush.msra.mxu0 0.0
        %969 = vmatpush.msra.mxu0 0.0
        %970 = vmatpush.msra.mxu0 0.0
        %971 = vmatpush.msra.mxu0 %v955
        %972 = vmatpush.msra.mxu0 %v954
        %973 = vmatpush.msra.mxu0 %v953
        %974 = vmatpush.msra.mxu0 %v952
        %975 = vmatmul.f32.gmra.mxu0 %v957
        %v976 = vpop.f32.mrf.mxu0
        %v977 = vadd.f32 0.0, %v976
        %978 = vdwg.mxu0
        %v979 = vmax.f32 %v977, 0.0
        %vm980 = vcmask 15360
        %v982 = vsel %vm980, %v355, 0
        %v985 = vsel %vm980, %v356, 0
        %v988 = vsel %vm980, %v357, 0
        %v991 = vsel %vm980, %v358, 0
        %vm993 = vcmask 1041408
        %v995 = vsel %vm993, %v979, 0
        %997 = vmatpush.msra.mxu0 0.0
        %998 = vmatpush.msra.mxu0 0.0
        %999 = vmatpush.msra.mxu0 0.0
        %1000 = vmatpush.msra.mxu0 0.0
        %1001 = vmatpush.msra.mxu0 0.0
        %1002 = vmatpush.msra.mxu0 0.0
        %1003 = vmatpush.msra.mxu0 0.0
        %1004 = vmatpush.msra.mxu0 0.0
        %1005 = vmatpush.msra.mxu0 0.0
        %1006 = vmatpush.msra.mxu0 0.0
        %1007 = vmatpush.msra.mxu0 0.0
        %1008 = vmatpush.msra.mxu0 0.0
        %1009 = vmatpush.msra.mxu0 0.0
        %1010 = vmatpush.msra.mxu0 0.0
        %1011 = vmatpush.msra.mxu0 0.0
        %1012 = vmatpush.msra.mxu0 %v995
        %1013 = vmatmul.f32.gmra.mxu0 %v982
        %v1014 = vpop.f32.mrf.mxu0
        %v1015 = vadd.f32 0.0, %v1014
        %1016 = vmatmul.f32.gmra.mxu0 %v985
        %v1017 = vpop.f32.mrf.mxu0
        %v1018 = vadd.f32 0.0, %v1017
        %1019 = vmatmul.f32.gmra.mxu0 %v988
        %v1020 = vpop.f32.mrf.mxu0
        %v1021 = vadd.f32 0.0, %v1020
        %1022 = vmatmul.f32.gmra.mxu0 %v991
        %v1023 = vpop.f32.mrf.mxu0
        %v1024 = vadd.f32 0.0, %v1023
        %1025 = vdwg.mxu0
        %1030 = vrot.lane.b32.xlu0 %v1015, 127
        %v1031 = vpop.permute.xlu0 %1030
        %1032 = vrot.lane.b32.xlu0 %v1018, 127
        %v1033 = vpop.permute.xlu0 %1032
        %1034 = vrot.lane.b32.xlu0 %v1021, 127
        %v1035 = vpop.permute.xlu0 %1034
        %1036 = vrot.lane.b32.xlu0 %v1024, 127
        %v1037 = vpop.permute.xlu0 %1036
        %v1042 = vadd.f32 %v1015, %v1031
        %v1043 = vadd.f32 %v1018, %v1033
        %v1044 = vadd.f32 %v1021, %v1035
        %v1045 = vadd.f32 %v1024, %v1037
        %v1046 = vxor.u32 %v1042, 2147483648
        %v1047 = vxor.u32 %v1043, 2147483648
        %v1048 = vxor.u32 %v1044, 2147483648
        %v1049 = vxor.u32 %v1045, 2147483648
        %v1050 = vmul.f32 %v1046, 1.442695
        %v1051 = vpow.pop %v1050
        %v1052 = vmul.f32 %v1047, 1.442695
        %v1053 = vpow.pop %v1052
        %v1054 = vmul.f32 %v1048, 1.442695
        %v1055 = vpow.pop %v1054
        %v1056 = vmul.f32 %v1049, 1.442695
        %v1057 = vpow.pop %v1056
        %v1058 = vadd.f32 %v1051, 1.0
        %v1059 = vadd.f32 %v1053, 1.0
        %v1060 = vadd.f32 %v1055, 1.0
        %v1061 = vadd.f32 %v1057, 1.0
        %v1062 = vrcp.pop %v1058
        %v1063 = vmul.f32 %v1058, %v1062
        %v1064 = vsub.f32 1.0, %v1063
        %v1065 = vmul.f32 %v1062, %v1064
        %v1066 = vadd.f32 %v1062, %v1065
        %vm1067 = vweird.f32 %v1058
        %vm1068 = vweird.f32 %v1062
        %vm1069 = vmor %vm1067, %vm1068
        %v1070 = vsel %vm1069, %v1062, %v1066
        %v1071 = vand.u32 2147483647, %v1058
        %vm1072 = vcmp.eq.f32.partialorder %v1071, 8.507059e+37
        %v1073 = vand.u32 %v1058, 2147483648
        %v1074 = vor.u32 1.1754944e-38, %v1073
        %v1075 = vsel %vm1072, %v1074, %v1070
        %v1076 = vmul.f32 1.0, %v1075
        %v1077 = vrcp.pop %v1059
        %v1078 = vmul.f32 %v1059, %v1077
        %v1079 = vsub.f32 1.0, %v1078
        %v1080 = vmul.f32 %v1077, %v1079
        %v1081 = vadd.f32 %v1077, %v1080
        %vm1082 = vweird.f32 %v1059
        %vm1083 = vweird.f32 %v1077
        %vm1084 = vmor %vm1082, %vm1083
        %v1085 = vsel %vm1084, %v1077, %v1081
        %v1086 = vand.u32 2147483647, %v1059
        %vm1087 = vcmp.eq.f32.partialorder %v1086, 8.507059e+37
        %v1088 = vand.u32 %v1059, 2147483648
        %v1089 = vor.u32 1.1754944e-38, %v1088
        %v1090 = vsel %vm1087, %v1089, %v1085
        %v1091 = vmul.f32 1.0, %v1090
        %v1092 = vrcp.pop %v1060
        %v1093 = vmul.f32 %v1060, %v1092
        %v1094 = vsub.f32 1.0, %v1093
        %v1095 = vmul.f32 %v1092, %v1094
        %v1096 = vadd.f32 %v1092, %v1095
        %vm1097 = vweird.f32 %v1060
        %vm1098 = vweird.f32 %v1092
        %vm1099 = vmor %vm1097, %vm1098
        %v1100 = vsel %vm1099, %v1092, %v1096
        %v1101 = vand.u32 2147483647, %v1060
        %vm1102 = vcmp.eq.f32.partialorder %v1101, 8.507059e+37
        %v1103 = vand.u32 %v1060, 2147483648
        %v1104 = vor.u32 1.1754944e-38, %v1103
        %v1105 = vsel %vm1102, %v1104, %v1100
        %v1106 = vmul.f32 1.0, %v1105
        %v1107 = vrcp.pop %v1061
        %v1108 = vmul.f32 %v1061, %v1107
        %v1109 = vsub.f32 1.0, %v1108
        %v1110 = vmul.f32 %v1107, %v1109
        %v1111 = vadd.f32 %v1107, %v1110
        %vm1112 = vweird.f32 %v1061
        %vm1113 = vweird.f32 %v1107
        %vm1114 = vmor %vm1112, %vm1113
        %v1115 = vsel %vm1114, %v1107, %v1111
        %v1116 = vand.u32 2147483647, %v1061
        %vm1117 = vcmp.eq.f32.partialorder %v1116, 8.507059e+37
        %v1118 = vand.u32 %v1061, 2147483648
        %v1119 = vor.u32 1.1754944e-38, %v1118
        %v1120 = vsel %vm1117, %v1119, %v1115
        %v1121 = vmul.f32 1.0, %v1120
        %1123 = vset.pattern.permute.xlu0 0
        %1124 = vperm.xlu0 %1123, %v1076
        %v1125 = vpop.permute.xlu0 %1124
        %1128 = vset.pattern.permute.xlu0 0
        %1129 = vperm.xlu0 %1128, %v1091
        %v1130 = vpop.permute.xlu0 %1129
        %1133 = vset.pattern.permute.xlu0 0
        %1134 = vperm.xlu0 %1133, %v1106
        %v1135 = vpop.permute.xlu0 %1134
        %1138 = vset.pattern.permute.xlu0 0
        %1139 = vperm.xlu0 %1138, %v1121
        %v1140 = vpop.permute.xlu0 %1139
        %v1142 = vmul.f32 %v429, %v1125
        %v1143 = vmul.f32 %v430, %v1125
        %v1144 = vmul.f32 %v431, %v1130
        %v1145 = vmul.f32 %v432, %v1130
        %v1146 = vmul.f32 %v433, %v1135
        %v1147 = vmul.f32 %v434, %v1135
        %v1148 = vmul.f32 %v435, %v1140
        %v1149 = vmul.f32 %v436, %v1140
        %v1150 = vadd.f32 %v908, %v1142
        %v1151 = vadd.f32 %v909, %v1143
        %v1152 = vadd.f32 %v910, %v1144
        %v1153 = vadd.f32 %v911, %v1145
        %v1154 = vadd.f32 %v912, %v1146
        %v1155 = vadd.f32 %v913, %v1147
        %v1156 = vadd.f32 %v914, %v1148
        %v1157 = vadd.f32 %v915, %v1149
        %1158 = vst [vmem:[%s341] sm:$0xff] %v1150
        %1159 = vst [vmem:[%s341 + $0x8] sm:$0xff] %v1151
        %1160 = vst [vmem:[%s341 + $0x10] sm:$0xff] %v1152
        %1161 = vst [vmem:[%s341 + $0x18] sm:$0xff] %v1153
        %1162 = vst [vmem:[%s341 + $0x20] sm:$0xff] %v1154
        %1163 = vst [vmem:[%s341 + $0x28] sm:$0xff] %v1155
        %1164 = vst [vmem:[%s341 + $0x30] sm:$0xff] %v1156
        %1165 = vst [vmem:[%s341 + $0x38] sm:$0xff] %v1157
        %p1166 = scmp.lt.s32.totalorder %s20, 1
        %s1167 = scalar_select %p1166, %s20, 1
        %s1168 = smul.addr %s1167, 8
        %s1169 = smul.addr %s1168, 8
        %s1170 = scalar_lea.vmem %s8, %s1169
        // Predicated region
        $region57: #{cif_block_apply.1} parent=51 // pred_check
          %p1171 = pneg %p216
        $region58: #{cif_block_apply.1} parent=51 // pred_check_branch
          %1173 = sbr.rel (%p1171) target = $region60
        $region59: #{cif_block_apply.1} parent=51 // pred_region
          _
        $region60: #{cif_block_apply.1} parent=51 // pred_fallthru
          _
      $region52: #{cif_block_apply.1} parent=5 // pred_fallthru
        _
      %p1174 = scmp.le.s32.totalorder 2, %s15
      // Predicated region
      $region61: #{cif_block_apply.1} parent=5 // pred_check
        %p1175 = pneg %p1174
      $region62: #{cif_block_apply.1} parent=5 // pred_check_branch
        %1177 = sbr.rel (%p1175) target = $region64
      $region63: #{cif_block_apply.1} parent=5 // pred_region
        %s1178 = ssub.s32 %s15, 2
        // Predicated region
        $region65: #{cif_block_apply.1} parent=63 // pred_check
          %p1179 = pneg %p222
        $region66: #{cif_block_apply.1} parent=63 // pred_check_branch
          %1181 = sbr.rel (%p1179) target = $region68
        $region67: #{cif_block_apply.1} parent=63 // pred_region
          %p1182 = scmp.lt.s32.totalorder %s21, 1
          %s1183 = scalar_select %p1182, %s21, 1
          %s1184 = smul.addr %s1183, 8
          %s1185 = smul.addr %s1184, 8
          %s1186 = scalar_lea.vmem %s8, %s1185
        $region68: #{cif_block_apply.1} parent=63 // pred_fallthru
          _
      $region64: #{cif_block_apply.1} parent=5 // pred_fallthru
        _
    $region6: #{cif_block_apply.1} parent=1 // loop_footer
      %s19 = sadd.s32 1, %s15
    $region7: #{cif_block_apply.1} parent=1 // loop_footer_branch
      %14 = sbr.rel target = $region3
    $region8: #{cif_block_apply.1} parent=1 // loop_exit
      _
    %1187 = vsyncpa [#allocation3], 1
    %s1188 = scalar_lea.sflag [#allocation3], 1
    %1189 = vsyncpa %s1188, 1

</llo_original>
